<compile_context>
chip_gen: v6e
topology: v6e:2x2x1
jax: 0.10.0
libtpu: 0.0.40
codegen_flags: <defaults>
</compile_context>

<pallas_src>
import jax
import jax.numpy as jnp
from jax.experimental import pallas as pl
from jax.experimental.pallas import tpu as pltpu


def _repvgg_kernel(x_ref, w_ref, b_ref, o_ref, col_ref):
    """Fused 3x3 conv + bias + ReLU on one (batch, row-tile) block.

    x_ref:   (1, TH+2, W+2, Cin_p)   padded input tile (compute dtype)
    w_ref:   (9*Cin_p, Cout_p)       re-parameterized weights, tap-major
    b_ref:   (1, Cout_p)             fused bias (f32)
    o_ref:   (1, TH, W, Cout_p)      output tile (f32)
    col_ref: (TH*W, 9*Cin_p)         im2col VMEM scratch (compute dtype)
    """
    _, th, w, _ = o_ref.shape
    cin = x_ref.shape[-1]

    # im2col: 9 shifted views of the padded tile -> one contiguous, lane-dense
    # LHS.  The dy slab is loaded once and re-sliced for the three dx taps.
    for dy in range(3):
        slab = x_ref[0, dy:dy + th, :, :]                 # (TH, W+2, Cin_p)
        for dx in range(3):
            t = dy * 3 + dx
            col_ref[:, t * cin:(t + 1) * cin] = (
                slab[:, dx:dx + w, :].reshape(th * w, cin))

    # Single wide-K MXU matmul, fp32 accumulation.
    acc = jnp.dot(col_ref[...], w_ref[...], preferred_element_type=jnp.float32)

    # fp32 epilogue: bias + ReLU, lane-dense store.
    acc = acc + b_ref[...]
    o_ref[...] = jnp.maximum(acc, 0.0).reshape(o_ref.shape).astype(o_ref.dtype)


def _round_up(x, m):
    return ((x + m - 1) // m) * m


def _pick_tile_h(H, W, cin_p, cout_p, compute_bytes, n_batch,
                 budget=8 * 1024 * 1024, min_steps=4):
    """Largest divisor of H whose double-buffered tile fits a VMEM budget,
    shrunk only as far as needed to give the grid >= min_steps steps
    (pipeline depth + second TensorCore)."""
    def fits(th):
        in_b = (th + 2) * (W + 2) * cin_p * compute_bytes
        out_b = th * W * cout_p * 4
        col_b = th * W * 9 * cin_p * compute_bytes
        return 2 * (in_b + out_b) + col_b <= budget

    cand = [d for d in range(1, H + 1) if H % d == 0 and fits(d)]
    if not cand:
        # TODO(synk): also tile over W when even a single output row overflows VMEM.
        return 1
    th = max(cand)
    while n_batch * (H // th) < min_steps:
        smaller = [d for d in cand if d < th]
        if not smaller:
            break
        th = max(smaller)
    return th


def _fuse_repvgg_params(params, eps=1e-5):
    """Full RepVGG re-parameterization (eval-mode BN) -> (w_eff OIHW 3x3, bias)."""
    w3 = params["w3"].astype(jnp.float32)                       # (Cout, Cin, 3, 3)
    g3, b3, m3, v3 = [p.astype(jnp.float32) for p in params["bn3"]]
    w1 = params["w1"].astype(jnp.float32)                       # (Cout, Cin, 1, 1)
    g1, b1, m1, v1 = [p.astype(jnp.float32) for p in params["bn1"]]

    cout, cin = w3.shape[:2]

    s3 = g3 / jnp.sqrt(v3 + eps)
    s1 = g1 / jnp.sqrt(v1 + eps)

    w_eff = w3 * s3[:, None, None, None]
    w_eff = w_eff + jnp.pad(w1 * s1[:, None, None, None],
                            ((0, 0), (0, 0), (1, 1), (1, 1)))
    bias = (b3 - m3 * s3) + (b1 - m1 * s1)

    bn_id = params.get("bn_id")
    if bn_id is not None and cin == cout:
        gi, bi, mi, vi = [p.astype(jnp.float32) for p in bn_id]
        si = gi / jnp.sqrt(vi + eps)
        idx = jnp.arange(cin)
        w_eff = w_eff.at[idx, idx, 1, 1].add(si)
        bias = bias + (bi - mi * si)
    return w_eff, bias


def repvgg_unit_forward(x_nchw, params, *, compute_dtype=jnp.bfloat16):
    """Eval-mode RepVggUnit forward. x_nchw: (N, Cin, H, W) f32 -> (N, Cout, H, W) f32.

    TODO(synk): only the stride=1 configuration is implemented (stride!=1 would
    need a strided output index_map and drops the identity branch).
    """
    N, cin, H, W = x_nchw.shape
    w_eff, bias = _fuse_repvgg_params(params)
    cout = w_eff.shape[0]

    cbytes = jnp.dtype(compute_dtype).itemsize
    cin_p = _round_up(cin, 128)
    cout_p = _round_up(cout, 128)

    # Re-parameterized weights -> tap-major (9*Cin_p, Cout_p) matmul RHS.
    w_hwio = jnp.transpose(w_eff, (2, 3, 1, 0)).reshape(9, cin, cout)
    w_mat = jnp.zeros((9, cin_p, cout_p), jnp.float32).at[:, :cin, :cout].set(w_hwio)
    w_mat = w_mat.reshape(9 * cin_p, cout_p).astype(compute_dtype)
    b_vec = jnp.zeros((1, cout_p), jnp.float32).at[0, :cout].set(bias)

    # NCHW -> NHWC, channel pad to a lane-dense multiple of 128, cast, pad=1 spatially.
    x_nhwc = jnp.transpose(x_nchw, (0, 2, 3, 1)).astype(compute_dtype)
    x_nhwc = jnp.pad(x_nhwc, ((0, 0), (0, 0), (0, 0), (0, cin_p - cin)))
    x_pad = jnp.pad(x_nhwc, ((0, 0), (1, 1), (1, 1), (0, 0)))

    # Spatial tiling over H with a 2-row halo, materialized in the wrapper.
    th = _pick_tile_h(H, W, cin_p, cout_p, cbytes, N)
    n_h = H // th
    x_tiles = jnp.stack(
        [x_pad[:, i * th:i * th + th + 2] for i in range(n_h)], axis=1)
    x_tiles = x_tiles.reshape(N * n_h, th + 2, W + 2, cin_p)

    # Explicit VMEM budget (double-buffered activation/output tiles + weights + scratch).
    in_tile_b = (th + 2) * (W + 2) * cin_p * cbytes
    out_tile_b = th * W * cout_p * 4
    w_b = 9 * cin_p * cout_p * cbytes
    col_b = th * W * 9 * cin_p * cbytes
    vmem_limit = min(64 * 1024 * 1024,
                     max(32 * 1024 * 1024,
                         2 * (in_tile_b + out_tile_b) + 2 * w_b + col_b + (1 << 20)))

    out = pl.pallas_call(
        _repvgg_kernel,
        out_shape=jax.ShapeDtypeStruct((N, H, W, cout_p), jnp.float32),
        grid_spec=pltpu.PrefetchScalarGridSpec(
            num_scalar_prefetch=0,
            grid=(N, n_h),
            in_specs=[
                # Activations: one (row-tile + halo) block per grid step.
                pl.BlockSpec((1, th + 2, W + 2, cin_p),
                             lambda n, h: (n * n_h + h, 0, 0, 0)),
                # Weights / bias: constant index_map -> DMA'd once, stay resident.
                pl.BlockSpec((9 * cin_p, cout_p), lambda n, h: (0, 0)),
                pl.BlockSpec((1, cout_p), lambda n, h: (0, 0)),
            ],
            out_specs=pl.BlockSpec((1, th, W, cout_p),
                                   lambda n, h: (n, h, 0, 0)),
            scratch_shapes=[pltpu.VMEM((th * W, 9 * cin_p), compute_dtype)],
        ),
        compiler_params=pltpu.CompilerParams(
            dimension_semantics=("parallel", "parallel"),
            vmem_limit_bytes=int(vmem_limit)),
    )(x_tiles, w_mat, b_vec)

    # Drop channel padding, NHWC -> NCHW (module's output convention).
    return jnp.transpose(out[..., :cout], (0, 3, 1, 2))


def _reference_forward(x_nchw, params):
    """Pure-JAX reference (lax.conv) of the same eval-mode three-branch forward."""
    eps = 1e-5
    w3 = params["w3"]
    g3, b3, m3, v3 = params["bn3"]
    w1 = params["w1"]
    g1, b1, m1, v1 = params["bn1"]
    gi, bi, mi, vi = params["bn_id"]

    def bn(y, g, b, m, v):
        return (y - m[None, :, None, None]) / jnp.sqrt(v + eps)[None, :, None, None] \
            * g[None, :, None, None] + b[None, :, None, None]

    c3 = jax.lax.conv_general_dilated(x_nchw, w3, (1, 1), ((1, 1), (1, 1)),
                                      dimension_numbers=("NCHW", "OIHW", "NCHW"))
    c1 = jax.lax.conv_general_dilated(x_nchw, w1, (1, 1), ((0, 0), (0, 0)),
                                      dimension_numbers=("NCHW", "OIHW", "NCHW"))
    y = bn(c3, g3, b3, m3, v3) + bn(c1, g1, b1, m1, v1) + bn(x_nchw, gi, bi, mi, vi)
    return jnp.maximum(y, 0.0)


def make_params(key, cin, cout):
    ks = jax.random.split(key, 10)

    def bn_params(k):
        k1, k2, k3, k4 = jax.random.split(k, 4)
        gamma = jax.random.uniform(k1, (cout,), jnp.float32, 0.5, 1.5)
        beta = jax.random.normal(k2, (cout,), jnp.float32) * 0.1
        mean = jax.random.normal(k3, (cout,), jnp.float32) * 0.1
        var = jax.random.uniform(k4, (cout,), jnp.float32, 0.5, 1.5)
        return (gamma, beta, mean, var)

    return {
        "w3": jax.random.normal(ks[0], (cout, cin, 3, 3), jnp.float32) * 0.1,
        "bn3": bn_params(ks[1]),
        "w1": jax.random.normal(ks[2], (cout, cin, 1, 1), jnp.float32) * 0.1,
        "bn1": bn_params(ks[3]),
        "bn_id": bn_params(ks[4]),
    }


if __name__ == "__main__":
    key = jax.random.PRNGKey(0)
    kx, kp = jax.random.split(key)

    N, C, H, W = 2, 4, 16, 16   # in_channels == out_channels, stride=1
    x = jax.random.normal(kx, (N, C, H, W), jnp.float32)
    params = make_params(kp, C, C)

    y_ref = _reference_forward(x, params)

    # Strict numerical check with the fp32 compute path.
    y_f32 = repvgg_unit_forward(x, params, compute_dtype=jnp.float32)
    jax.block_until_ready(y_f32)
    assert y_f32.shape == (N, C, H, W)
    assert jnp.allclose(y_f32, y_ref, atol=1e-4, rtol=1e-4), "fp32 mismatch vs reference"

    # Fast path (default): bf16 MXU inputs, fp32 accumulation / epilogue.
    y_bf16 = repvgg_unit_forward(x, params)
    jax.block_until_ready(y_bf16)
    assert y_bf16.shape == (N, C, H, W)
    assert jnp.allclose(y_bf16, y_ref, atol=5e-2, rtol=5e-2), "bf16 mismatch vs reference"

    print("KERNEL_OK")
</pallas_src>

<mosaic_0001>
module attributes {stable_mosaic.version = 11 : i64} {
  func.func @_repvgg_kernel(%arg0: i32, %arg1: i32, %arg2: memref<1x10x18x128xf32, #tpu.memory_space<vmem>>, %arg3: memref<1152x128xf32, #tpu.memory_space<vmem>>, %arg4: memref<1x128xf32, #tpu.memory_space<vmem>>, %arg5: memref<1x8x16x128xf32, #tpu.memory_space<vmem>>, %arg6: memref<128x1152xf32, #tpu.memory_space<vmem>>) attributes {dimension_semantics = [#tpu.dimension_semantics<parallel>, #tpu.dimension_semantics<parallel>], iteration_bounds = array<i64: 2, 2>, scalar_prefetch = 0 : i64, scratch_operands = 1 : i64, tpu.core_type = #tpu.core_type<tc>, window_params = [{transform_indices = @transform_0, window_bounds = array<i64: 1, 10, 18, 128>}, {pipeline_mode = #tpu.pipeline_mode<synchronous>, transform_indices = @transform_1, window_bounds = array<i64: 1152, 128>}, {pipeline_mode = #tpu.pipeline_mode<synchronous>, transform_indices = @transform_2, window_bounds = array<i64: 1, 128>}, {transform_indices = @transform_3, window_bounds = array<i64: 1, 8, 16, 128>}]} {
    %c0 = arith.constant 0 : index
    %c0_0 = arith.constant 0 : index
    %c0_1 = arith.constant 0 : index
    %c0_2 = arith.constant 0 : index
    %0 = vector.load %arg2[%c0, %c0_0, %c0_1, %c0_2] : memref<1x10x18x128xf32, #tpu.memory_space<vmem>>, vector<1x8x18x128xf32>
    %1 = vector.shape_cast %0 : vector<1x8x18x128xf32> to vector<8x18x128xf32>
    %2 = vector.extract_strided_slice %1 {offsets = [0, 0, 0], sizes = [8, 16, 128], strides = [1, 1, 1]} : vector<8x18x128xf32> to vector<8x16x128xf32>
    %3 = vector.shape_cast %2 : vector<8x16x128xf32> to vector<128x128xf32>
    %c0_3 = arith.constant 0 : index
    %c0_4 = arith.constant 0 : index
    %4 = vector.load %arg6[%c0_3, %c0_4] : memref<128x1152xf32, #tpu.memory_space<vmem>>, vector<128x128xf32>
    tpu.vector_store %arg6[%c0_3, %c0_4], %3 {strides = array<i32>} : memref<128x1152xf32, #tpu.memory_space<vmem>>, vector<128x128xf32>,
    %5 = vector.extract_strided_slice %1 {offsets = [0, 1, 0], sizes = [8, 16, 128], strides = [1, 1, 1]} : vector<8x18x128xf32> to vector<8x16x128xf32>
    %6 = vector.shape_cast %5 : vector<8x16x128xf32> to vector<128x128xf32>
    %c0_5 = arith.constant 0 : index
    %c128 = arith.constant 128 : index
    %7 = vector.load %arg6[%c0_5, %c128] : memref<128x1152xf32, #tpu.memory_space<vmem>>, vector<128x128xf32>
    tpu.vector_store %arg6[%c0_5, %c128], %6 {strides = array<i32>} : memref<128x1152xf32, #tpu.memory_space<vmem>>, vector<128x128xf32>,
    %8 = vector.extract_strided_slice %1 {offsets = [0, 2, 0], sizes = [8, 16, 128], strides = [1, 1, 1]} : vector<8x18x128xf32> to vector<8x16x128xf32>
    %9 = vector.shape_cast %8 : vector<8x16x128xf32> to vector<128x128xf32>
    %c0_6 = arith.constant 0 : index
    %c256 = arith.constant 256 : index
    %10 = vector.load %arg6[%c0_6, %c256] : memref<128x1152xf32, #tpu.memory_space<vmem>>, vector<128x128xf32>
    tpu.vector_store %arg6[%c0_6, %c256], %9 {strides = array<i32>} : memref<128x1152xf32, #tpu.memory_space<vmem>>, vector<128x128xf32>,
    %c0_7 = arith.constant 0 : index
    %c1 = arith.constant 1 : index
    %c0_8 = arith.constant 0 : index
    %c0_9 = arith.constant 0 : index
    %11 = vector.load %arg2[%c0_7, %c1, %c0_8, %c0_9] : memref<1x10x18x128xf32, #tpu.memory_space<vmem>>, vector<1x8x18x128xf32>
    %12 = vector.shape_cast %11 : vector<1x8x18x128xf32> to vector<8x18x128xf32>
    %13 = vector.extract_strided_slice %12 {offsets = [0, 0, 0], sizes = [8, 16, 128], strides = [1, 1, 1]} : vector<8x18x128xf32> to vector<8x16x128xf32>
    %14 = vector.shape_cast %13 : vector<8x16x128xf32> to vector<128x128xf32>
    %c0_10 = arith.constant 0 : index
    %c384 = arith.constant 384 : index
    %15 = vector.load %arg6[%c0_10, %c384] : memref<128x1152xf32, #tpu.memory_space<vmem>>, vector<128x128xf32>
    tpu.vector_store %arg6[%c0_10, %c384], %14 {strides = array<i32>} : memref<128x1152xf32, #tpu.memory_space<vmem>>, vector<128x128xf32>,
    %16 = vector.extract_strided_slice %12 {offsets = [0, 1, 0], sizes = [8, 16, 128], strides = [1, 1, 1]} : vector<8x18x128xf32> to vector<8x16x128xf32>
    %17 = vector.shape_cast %16 : vector<8x16x128xf32> to vector<128x128xf32>
    %c0_11 = arith.constant 0 : index
    %c512 = arith.constant 512 : index
    %18 = vector.load %arg6[%c0_11, %c512] : memref<128x1152xf32, #tpu.memory_space<vmem>>, vector<128x128xf32>
    tpu.vector_store %arg6[%c0_11, %c512], %17 {strides = array<i32>} : memref<128x1152xf32, #tpu.memory_space<vmem>>, vector<128x128xf32>,
    %19 = vector.extract_strided_slice %12 {offsets = [0, 2, 0], sizes = [8, 16, 128], strides = [1, 1, 1]} : vector<8x18x128xf32> to vector<8x16x128xf32>
    %20 = vector.shape_cast %19 : vector<8x16x128xf32> to vector<128x128xf32>
    %c0_12 = arith.constant 0 : index
    %c640 = arith.constant 640 : index
    %21 = vector.load %arg6[%c0_12, %c640] : memref<128x1152xf32, #tpu.memory_space<vmem>>, vector<128x128xf32>
    tpu.vector_store %arg6[%c0_12, %c640], %20 {strides = array<i32>} : memref<128x1152xf32, #tpu.memory_space<vmem>>, vector<128x128xf32>,
    %c0_13 = arith.constant 0 : index
    %c2 = arith.constant 2 : index
    %c0_14 = arith.constant 0 : index
    %c0_15 = arith.constant 0 : index
    %22 = vector.load %arg2[%c0_13, %c2, %c0_14, %c0_15] : memref<1x10x18x128xf32, #tpu.memory_space<vmem>>, vector<1x8x18x128xf32>
    %23 = vector.shape_cast %22 : vector<1x8x18x128xf32> to vector<8x18x128xf32>
    %24 = vector.extract_strided_slice %23 {offsets = [0, 0, 0], sizes = [8, 16, 128], strides = [1, 1, 1]} : vector<8x18x128xf32> to vector<8x16x128xf32>
    %25 = vector.shape_cast %24 : vector<8x16x128xf32> to vector<128x128xf32>
    %c0_16 = arith.constant 0 : index
    %c768 = arith.constant 768 : index
    %26 = vector.load %arg6[%c0_16, %c768] : memref<128x1152xf32, #tpu.memory_space<vmem>>, vector<128x128xf32>
    tpu.vector_store %arg6[%c0_16, %c768], %25 {strides = array<i32>} : memref<128x1152xf32, #tpu.memory_space<vmem>>, vector<128x128xf32>,
    %27 = vector.extract_strided_slice %23 {offsets = [0, 1, 0], sizes = [8, 16, 128], strides = [1, 1, 1]} : vector<8x18x128xf32> to vector<8x16x128xf32>
    %28 = vector.shape_cast %27 : vector<8x16x128xf32> to vector<128x128xf32>
    %c0_17 = arith.constant 0 : index
    %c896 = arith.constant 896 : index
    %29 = vector.load %arg6[%c0_17, %c896] : memref<128x1152xf32, #tpu.memory_space<vmem>>, vector<128x128xf32>
    tpu.vector_store %arg6[%c0_17, %c896], %28 {strides = array<i32>} : memref<128x1152xf32, #tpu.memory_space<vmem>>, vector<128x128xf32>,
    %30 = vector.extract_strided_slice %23 {offsets = [0, 2, 0], sizes = [8, 16, 128], strides = [1, 1, 1]} : vector<8x18x128xf32> to vector<8x16x128xf32>
    %31 = vector.shape_cast %30 : vector<8x16x128xf32> to vector<128x128xf32>
    %c0_18 = arith.constant 0 : index
    %c1024 = arith.constant 1024 : index
    %32 = vector.load %arg6[%c0_18, %c1024] : memref<128x1152xf32, #tpu.memory_space<vmem>>, vector<128x128xf32>
    tpu.vector_store %arg6[%c0_18, %c1024], %31 {strides = array<i32>} : memref<128x1152xf32, #tpu.memory_space<vmem>>, vector<128x128xf32>,
    %c0_19 = arith.constant 0 : index
    %c0_20 = arith.constant 0 : index
    %33 = vector.load %arg6[%c0_19, %c0_20] : memref<128x1152xf32, #tpu.memory_space<vmem>>, vector<128x1152xf32>
    %c0_21 = arith.constant 0 : index
    %c0_22 = arith.constant 0 : index
    %34 = vector.load %arg3[%c0_21, %c0_22] : memref<1152x128xf32, #tpu.memory_space<vmem>>, vector<1152x128xf32>
    %cst = arith.constant dense<0.000000e+00> : vector<128x128xf32>
    %35 = tpu.matmul %33, %34, %cst {dimension_numbers = #tpu.dot_dimension_numbers<[1], [0], [0], [1], [0, 0, 1, 1], [], []>} : vector<128x1152xf32>, vector<1152x128xf32>, vector<128x128xf32> -> vector<128x128xf32>
    %c0_23 = arith.constant 0 : index
    %c0_24 = arith.constant 0 : index
    %36 = vector.load %arg4[%c0_23, %c0_24] : memref<1x128xf32, #tpu.memory_space<vmem>>, vector<1x128xf32>
    %37 = vector.broadcast %36 : vector<1x128xf32> to vector<128x128xf32>
    %38 = arith.addf %35, %37 : vector<128x128xf32>
    %cst_25 = arith.constant 0.000000e+00 : f32
    %39 = vector.broadcast %cst_25 : f32 to vector<128x128xf32>
    %40 = arith.maximumf %38, %39 : vector<128x128xf32>
    %41 = vector.shape_cast %40 : vector<128x128xf32> to vector<1x8x16x128xf32>
    %c0_26 = arith.constant 0 : index
    %c0_27 = arith.constant 0 : index
    %c0_28 = arith.constant 0 : index
    %c0_29 = arith.constant 0 : index
    %42 = vector.load %arg5[%c0_26, %c0_27, %c0_28, %c0_29] : memref<1x8x16x128xf32, #tpu.memory_space<vmem>>, vector<1x8x16x128xf32>
    tpu.vector_store %arg5[%c0_26, %c0_27, %c0_28, %c0_29], %41 {strides = array<i32>} : memref<1x8x16x128xf32, #tpu.memory_space<vmem>>, vector<1x8x16x128xf32>,
    return
  }
  func.func @transform_0(%arg0: i32, %arg1: i32) -> (i32, i32, i32, i32) {
    %c2_i32 = arith.constant 2 : i32
    %0 = arith.muli %arg0, %c2_i32 : i32
    %1 = arith.addi %0, %arg1 : i32
    %c0_i32 = arith.constant 0 : i32
    %c0_i32_0 = arith.constant 0 : i32
    %c0_i32_1 = arith.constant 0 : i32
    %c0_i32_2 = arith.constant 0 : i32
    return %1, %c0_i32, %c0_i32_0, %c0_i32_1 : i32, i32, i32, i32
  }
  func.func @transform_1(%arg0: i32, %arg1: i32) -> (i32, i32) {
    %c0_i32 = arith.constant 0 : i32
    %c0_i32_0 = arith.constant 0 : i32
    %c0_i32_1 = arith.constant 0 : i32
    return %c0_i32, %c0_i32_0 : i32, i32
  }
  func.func @transform_2(%arg0: i32, %arg1: i32) -> (i32, i32) {
    %c0_i32 = arith.constant 0 : i32
    %c0_i32_0 = arith.constant 0 : i32
    %c0_i32_1 = arith.constant 0 : i32
    return %c0_i32, %c0_i32_0 : i32, i32
  }
  func.func @transform_3(%arg0: i32, %arg1: i32) -> (i32, i32, i32, i32) {
    %c0_i32 = arith.constant 0 : i32
    %c0_i32_0 = arith.constant 0 : i32
    %c0_i32_1 = arith.constant 0 : i32
    return %arg0, %arg1, %c0_i32, %c0_i32_0 : i32, i32, i32, i32
  }
}

</mosaic_0001>

<llo_original>
// kernel: tpu_custom_call.1
$region0: #{tpu_custom_call.1}
  #allocation0 [shape = 'u32[]', space=smem, size = 0x4, offset = 0x4, fixed_abs, tag = 'smem constant byte address 0x4 - core index']
  #allocation1 [shape = 'u32[144,128]{1,0:T(1,128)}', space=vmem, size = 0x12000, scoped, tag = 'internal scratch']
  #allocation2 [shape = 'f32[128,1152]{1,0:T(8,128)}', space=vmem, size = 0x90000, scoped, tag = 'scratch operand']
  %s0 = inlined_call_operand.vmem [shape: f32[4,10,18,128], index: 0, kind: input, shape index: {}]
  %s1 = inlined_call_operand.vmem [shape: f32[1152,128], index: 1, kind: input, shape index: {}]
  %s2 = inlined_call_operand.vmem [shape: f32[1,128], index: 2, kind: input, shape index: {}]
  %s3 = inlined_call_operand.hbm [shape: f32[2,16,16,128], index: 3, kind: output, shape index: {}]
  %s4 = sld [smem:[#allocation0]]
  $region45: #{tpu_custom_call.1} parent=0
    _
  %s6 = ssub.s32 1, %s4
  %s7 = scalar_select 0, %s6, %s4
  $region1: #{tpu_custom_call.1} parent=0
    #allocation3 [shape = 'u8[131072]{0}', space=vmem, size = 0x20000, scoped, tag = 'output window, operand 0']
    #allocation4 [shape = 's32[2]{0}', space=sflag, size = 0x8, scoped, tag = 'scoped memory for tpu_custom_call.1']
    %8 = vsyncpa [#allocation4], 0
    %s9 = scalar_lea.sflag [#allocation4], 1
    %10 = vsyncpa %s9, 0
    loop: start=0, step=1, limit=6
    $region2: #{tpu_custom_call.1} parent=1 // loop_pre_header
      _
    $region3: #{tpu_custom_call.1} parent=1 // loop_header
      %s12 = sphi 0, %s16
      %p13 = scmp.ge.s32.totalorder %s12, 6
      %s19 = sphi 0, %s31
      %s20 = sphi 0, %s27
      %s21 = sphi 0, %s19
      %s22 = sphi 0, %s20
      %s23 = sphi 0, %s21
      %s24 = sphi 0, %s22
      %s38 = sphi 0, %s40
      %s41 = sphi 0, %s38
      %s42 = sphi 0, %s41
      %s58 = sphi 0, %s42
      %s62 = sphi 0, %s62
      %s64 = sphi 0, %s62
      %s65 = sphi 0, %s64
      %s79 = sphi 0, %s65
      %s83 = sphi 0, %s83
      %s85 = sphi 0, %s83
      %s86 = sphi 0, %s85
      %s100 = sphi 0, %s86
      %s108 = sphi 0, %s110
      %s111 = sphi 0, %s108
      %s112 = sphi 0, %s111
      %s128 = sphi 0, %s112
    $region4: #{tpu_custom_call.1} parent=1 // loop_header_branch
      %15 = sbr.rel (%p13) target = $region8
    $region5: #{tpu_custom_call.1} parent=1 // loop_body
      %s17 = ssub.s32 %s12, 1
      %s18 = ssub.s32 %s12, 2
      %s25 = sadd.s32 1, %s20
      %p26 = scmp.ge.s32.totalorder %s25, 2
      %s27 = scalar_select %p26, 0, %s25
      %s28 = sadd.s32 1, %s19
      %s29 = scalar_select %p26, %s28, %s19
      %p30 = scmp.ge.s32.totalorder %s29, 2
      %s31 = scalar_select %p30, 0, %s29
      %s32 = smul.u32 %s19, 2
      %s33 = sadd.s32 %s32, %s20
      %s34 = smul.u32 %s31, 2
      %s35 = sadd.s32 %s34, %s27
      %s36 = ssub.s32 %s33, %s35
      %p37 = scmp.eq.s32.totalorder %s36, 0
      %s39 = sadd.s32 %s38, 1
      %s40 = scalar_select %p37, %s38, %s39
      %p43 = pneg %p37
      %p44 = scmp.eq.s32.totalorder %s12, 3
      %p45 = por %p43, %p44
      %p46 = scmp.ne.s32.totalorder %s38, %s41
      %p47 = scmp.eq.s32.totalorder %s12, 0
      %p48 = por %p46, %p47
      %p49 = scmp.ne.s32.totalorder %s38, %s41
      %p50 = scmp.eq.s32.totalorder %s17, 3
      %p51 = por %p49, %p50
      %p52 = scmp.ne.s32.totalorder %s41, %s42
      %p53 = scmp.eq.s32.totalorder %s17, 0
      %p54 = por %p52, %p53
      %p55 = scmp.ne.s32.totalorder %s41, %s42
      %p56 = scmp.eq.s32.totalorder %s18, 3
      %p57 = por %p55, %p56
      %p59 = scmp.ne.s32.totalorder %s42, %s58
      %p60 = scmp.eq.s32.totalorder %s18, 0
      %p61 = por %p59, %p60
      %s63 = sadd.s32 %s62, 1
      %p66 = scmp.eq.s32.totalorder %s12, 3
      %p67 = scmp.ne.s32.totalorder %s62, %s64
      %p68 = scmp.eq.s32.totalorder %s12, 0
      %p69 = por %p67, %p68
      %p70 = scmp.ne.s32.totalorder %s62, %s64
      %p71 = scmp.eq.s32.totalorder %s17, 3
      %p72 = por %p70, %p71
      %p73 = scmp.ne.s32.totalorder %s64, %s65
      %p74 = scmp.eq.s32.totalorder %s17, 0
      %p75 = por %p73, %p74
      %p76 = scmp.ne.s32.totalorder %s64, %s65
      %p77 = scmp.eq.s32.totalorder %s18, 3
      %p78 = por %p76, %p77
      %p80 = scmp.ne.s32.totalorder %s65, %s79
      %p81 = scmp.eq.s32.totalorder %s18, 0
      %p82 = por %p80, %p81
      %s84 = sadd.s32 %s83, 1
      %p87 = scmp.eq.s32.totalorder %s12, 3
      %p88 = scmp.ne.s32.totalorder %s83, %s85
      %p89 = scmp.eq.s32.totalorder %s12, 0
      %p90 = por %p88, %p89
      %p91 = scmp.ne.s32.totalorder %s83, %s85
      %p92 = scmp.eq.s32.totalorder %s17, 3
      %p93 = por %p91, %p92
      %p94 = scmp.ne.s32.totalorder %s85, %s86
      %p95 = scmp.eq.s32.totalorder %s17, 0
      %p96 = por %p94, %p95
      %p97 = scmp.ne.s32.totalorder %s85, %s86
      %p98 = scmp.eq.s32.totalorder %s18, 3
      %p99 = por %p97, %p98
      %p101 = scmp.ne.s32.totalorder %s86, %s100
      %p102 = scmp.eq.s32.totalorder %s18, 0
      %p103 = por %p101, %p102
      %s104 = ssub.s32 %s19, %s31
      %s105 = ssub.s32 %s20, %s27
      %s106 = sor.u32 %s104, %s105
      %p107 = scmp.eq.s32.totalorder %s106, 0
      %s109 = sadd.s32 %s108, 1
      %s110 = scalar_select %p107, %s108, %s109
      %p113 = pneg %p107
      %p114 = scmp.eq.s32.totalorder %s12, 3
      %p115 = por %p113, %p114
      %p116 = scmp.ne.s32.totalorder %s108, %s111
      %p117 = scmp.eq.s32.totalorder %s12, 0
      %p118 = por %p116, %p117
      %p119 = scmp.ne.s32.totalorder %s108, %s111
      %p120 = scmp.eq.s32.totalorder %s17, 3
      %p121 = por %p119, %p120
      %p122 = scmp.ne.s32.totalorder %s111, %s112
      %p123 = scmp.eq.s32.totalorder %s17, 0
      %p124 = por %p122, %p123
      %p125 = scmp.ne.s32.totalorder %s111, %s112
      %p126 = scmp.eq.s32.totalorder %s18, 3
      %p127 = por %p125, %p126
      %p129 = scmp.ne.s32.totalorder %s112, %s128
      %p130 = scmp.eq.s32.totalorder %s18, 0
      %p131 = por %p129, %p130
      %p132 = scmp.le.s32.totalorder 1, %s12
      %p133 = scmp.lt.s32.totalorder %s12, 5
      %p134 = pnand %p132, %p133
      %p135 = pneg %p134
      // Predicated region
      $region9: #{tpu_custom_call.1} parent=5 // pred_check
        _
      $region10: #{tpu_custom_call.1} parent=5 // pred_check_branch
        %137 = sbr.rel (%p134) target = $region12
      $region11: #{tpu_custom_call.1} parent=5 // pred_region
        %s138 = ssub.s32 %s12, 1
        // Predicated region
        $region13: #{tpu_custom_call.1} parent=11 // pred_check
          %p139 = pneg %p75
        $region14: #{tpu_custom_call.1} parent=11 // pred_check_branch
          %141 = sbr.rel (%p139) target = $region16
        $region15: #{tpu_custom_call.1} parent=11 // pred_region
          _
        $region16: #{tpu_custom_call.1} parent=11 // pred_fallthru
          _
        // Predicated region
        $region17: #{tpu_custom_call.1} parent=11 // pred_check
          %p142 = pneg %p96
        $region18: #{tpu_custom_call.1} parent=11 // pred_check_branch
          %144 = sbr.rel (%p142) target = $region20
        $region19: #{tpu_custom_call.1} parent=11 // pred_region
          _
        $region20: #{tpu_custom_call.1} parent=11 // pred_fallthru
          _
      $region12: #{tpu_custom_call.1} parent=5 // pred_fallthru
        _
      %p145 = scmp.lt.s32.totalorder %s12, 4
      // Predicated region
      $region21: #{tpu_custom_call.1} parent=5 // pred_check
        %p146 = pneg %p145
      $region22: #{tpu_custom_call.1} parent=5 // pred_check_branch
        %148 = sbr.rel (%p146) target = $region24
      $region23: #{tpu_custom_call.1} parent=5 // pred_region
        // Predicated region
        $region25: #{tpu_custom_call.1} parent=23 // pred_check
          %p149 = pneg %p48
        $region26: #{tpu_custom_call.1} parent=23 // pred_check_branch
          %151 = sbr.rel (%p149) target = $region28
        $region27: #{tpu_custom_call.1} parent=23 // pred_region
          %s152 = smul.u32 %s19, 2
          %s153 = sadd.s32 %s152, %s20
          %p154 = scmp.lt.s32.totalorder %s153, 3
          %s155 = scalar_select %p154, %s153, 3
          %s156 = smul.addr %s155, 30
          %s157 = smul.addr %s156, 8
          %s158 = scalar_lea.vmem %s0, %s157
          %s159 = smul.u32 %s19, 2
          %s160 = sadd.s32 %s159, %s20
        $region28: #{tpu_custom_call.1} parent=23 // pred_fallthru
          _
      $region24: #{tpu_custom_call.1} parent=5 // pred_fallthru
        _
      %p161 = scmp.le.s32.totalorder 1, %s12
      %p162 = scmp.lt.s32.totalorder %s12, 5
      %p163 = pnand %p161, %p162
      %p164 = pneg %p163
      // Predicated region
      $region29: #{tpu_custom_call.1} parent=5 // pred_check
        _
      $region30: #{tpu_custom_call.1} parent=5 // pred_check_branch
        %166 = sbr.rel (%p163) target = $region32
      $region31: #{tpu_custom_call.1} parent=5 // pred_region
        %s167 = ssub.s32 %s12, 1
        %s168 = smul.u32 %s21, 2
        %s169 = sadd.s32 %s168, %s22
        %p170 = scmp.lt.s32.totalorder %s169, 3
        %s171 = scalar_select %p170, %s169, 3
        %s172 = smul.addr %s171, 30
        %s173 = smul.addr %s172, 8
        %s174 = scalar_lea.vmem %s0, %s173
        %p175 = pneg %p54
        %p176 = pneg %p51
        %p177 = pneg %p75
        %p178 = pneg %p72
        %p179 = pneg %p96
        %p180 = pneg %p93
        %p181 = pneg %p124
        %p182 = pneg %p121
        %s183 = sand.u32 %s111, 1
        %s184 = scalar_lea.sflag [#allocation4], %s183
        %s185 = sand.u32 %s111, 1
        %s186 = smul.addr %s185, 128
        %s187 = scalar_lea.vmem [#allocation3], %s186
        %s188 = smul.u32 %s21, 2
        %s189 = sadd.s32 %s188, %s22
        %p190 = scmp.lt.s32.totalorder %s189, 3
        %s191 = scalar_select %p190, %s189, 3
        %s192 = smul.addr %s191, 30
        %s193 = smul.addr %s192, 8
        %s194 = scalar_lea.vmem %s0, %s193
        %s195 = smul.u32 %s21, 2
        %s196 = sadd.s32 %s195, %s22
        %s197 = smul.u32 8, %s22
        %v198 = vld [vmem:[%s194] sm:$0xff]
        %v199 = vld [vmem:[%s194 + $0x8] sm:$0xff]
        %v200 = vld [vmem:[%s194 + $0x10] sm:$0x3]
        %v201 = vld [vmem:[%s194 + $0x18] sm:$0xff]
        %v202 = vld [vmem:[%s194 + $0x20] sm:$0xff]
        %v203 = vld [vmem:[%s194 + $0x28] sm:$0x3]
        %v204 = vld [vmem:[%s194 + $0x30] sm:$0xff]
        %v205 = vld [vmem:[%s194 + $0x38] sm:$0xff]
        %v206 = vld [vmem:[%s194 + $0x40] sm:$0x3]
        %v207 = vld [vmem:[%s194 + $0x48] sm:$0xff]
        %v208 = vld [vmem:[%s194 + $0x50] sm:$0xff]
        %v209 = vld [vmem:[%s194 + $0x58] sm:$0x3]
        %v210 = vld [vmem:[%s194 + $0x60] sm:$0xff]
        %v211 = vld [vmem:[%s194 + $0x68] sm:$0xff]
        %v212 = vld [vmem:[%s194 + $0x70] sm:$0x3]
        %v213 = vld [vmem:[%s194 + $0x78] sm:$0xff]
        %v214 = vld [vmem:[%s194 + $0x80] sm:$0xff]
        %v215 = vld [vmem:[%s194 + $0x88] sm:$0x3]
        %v216 = vld [vmem:[%s194 + $0x90] sm:$0xff]
        %v217 = vld [vmem:[%s194 + $0x98] sm:$0xff]
        %v218 = vld [vmem:[%s194 + $0xa0] sm:$0x3]
        %v219 = vld [vmem:[%s194 + $0xa8] sm:$0xff]
        %v220 = vld [vmem:[%s194 + $0xb0] sm:$0xff]
        %v221 = vld [vmem:[%s194 + $0xb8] sm:$0x3]
        %222 = vst [vmem:[#allocation2] sm:$0xff] %v198
        %223 = vst [vmem:[#allocation2 + $0x48] sm:$0xff] %v199
        %224 = vst [vmem:[#allocation2 + $0x90] sm:$0xff] %v201
        %225 = vst [vmem:[#allocation2 + $0xd8] sm:$0xff] %v202
        %226 = vst [vmem:[#allocation2 + $0x120] sm:$0xff] %v204
        %227 = vst [vmem:[#allocation2 + $0x168] sm:$0xff] %v205
        %228 = vst [vmem:[#allocation2 + $0x1b0] sm:$0xff] %v207
        %229 = vst [vmem:[#allocation2 + $0x1f8] sm:$0xff] %v208
        %230 = vst [vmem:[#allocation2 + $0x240] sm:$0xff] %v210
        %231 = vst [vmem:[#allocation2 + $0x288] sm:$0xff] %v211
        %232 = vst [vmem:[#allocation2 + $0x2d0] sm:$0xff] %v213
        %233 = vst [vmem:[#allocation2 + $0x318] sm:$0xff] %v214
        %234 = vst [vmem:[#allocation2 + $0x360] sm:$0xff] %v216
        %235 = vst [vmem:[#allocation2 + $0x3a8] sm:$0xff] %v217
        %236 = vst [vmem:[#allocation2 + $0x3f0] sm:$0xff] %v219
        %237 = vst [vmem:[#allocation2 + $0x438] sm:$0xff] %v220
        %vm262 = vcmask 1046528
        %v263 = vrot.slane %v198, 1
        %v264 = vrot.slane %v199, 1
        %v265 = vsel %vm262, %v263, %v264
        %v266 = vrot.slane %v200, 1
        %v267 = vsel %vm262, %v264, %v266
        %v268 = vrot.slane %v201, 1
        %v269 = vrot.slane %v202, 1
        %v270 = vsel %vm262, %v268, %v269
        %v271 = vrot.slane %v203, 1
        %v272 = vsel %vm262, %v269, %v271
        %v273 = vrot.slane %v204, 1
        %v274 = vrot.slane %v205, 1
        %v275 = vsel %vm262, %v273, %v274
        %v276 = vrot.slane %v206, 1
        %v277 = vsel %vm262, %v274, %v276
        %v278 = vrot.slane %v207, 1
        %v279 = vrot.slane %v208, 1
        %v280 = vsel %vm262, %v278, %v279
        %v281 = vrot.slane %v209, 1
        %v282 = vsel %vm262, %v279, %v281
        %v283 = vrot.slane %v210, 1
        %v284 = vrot.slane %v211, 1
        %v285 = vsel %vm262, %v283, %v284
        %v286 = vrot.slane %v212, 1
        %v287 = vsel %vm262, %v284, %v286
        %v288 = vrot.slane %v213, 1
        %v289 = vrot.slane %v214, 1
        %v290 = vsel %vm262, %v288, %v289
        %v291 = vrot.slane %v215, 1
        %v292 = vsel %vm262, %v289, %v291
        %v293 = vrot.slane %v216, 1
        %v294 = vrot.slane %v217, 1
        %v295 = vsel %vm262, %v293, %v294
        %v296 = vrot.slane %v218, 1
        %v297 = vsel %vm262, %v294, %v296
        %v298 = vrot.slane %v219, 1
        %v299 = vrot.slane %v220, 1
        %v300 = vsel %vm262, %v298, %v299
        %v301 = vrot.slane %v221, 1
        %v302 = vsel %vm262, %v299, %v301
        %319 = vst [vmem:[#allocation2 + $0x8] sm:$0xff] %v265
        %320 = vst [vmem:[#allocation2 + $0x50] sm:$0xff] %v267
        %321 = vst [vmem:[#allocation2 + $0x98] sm:$0xff] %v270
        %322 = vst [vmem:[#allocation2 + $0xe0] sm:$0xff] %v272
        %323 = vst [vmem:[#allocation2 + $0x128] sm:$0xff] %v275
        %324 = vst [vmem:[#allocation2 + $0x170] sm:$0xff] %v277
        %325 = vst [vmem:[#allocation2 + $0x1b8] sm:$0xff] %v280
        %326 = vst [vmem:[#allocation2 + $0x200] sm:$0xff] %v282
        %327 = vst [vmem:[#allocation2 + $0x248] sm:$0xff] %v285
        %328 = vst [vmem:[#allocation2 + $0x290] sm:$0xff] %v287
        %329 = vst [vmem:[#allocation2 + $0x2d8] sm:$0xff] %v290
        %330 = vst [vmem:[#allocation2 + $0x320] sm:$0xff] %v292
        %331 = vst [vmem:[#allocation2 + $0x368] sm:$0xff] %v295
        %332 = vst [vmem:[#allocation2 + $0x3b0] sm:$0xff] %v297
        %333 = vst [vmem:[#allocation2 + $0x3f8] sm:$0xff] %v300
        %334 = vst [vmem:[#allocation2 + $0x440] sm:$0xff] %v302
        %vm335 = vcmask 1045504
        %v336 = vrot.slane %v198, 2
        %v337 = vrot.slane %v199, 2
        %v338 = vsel %vm335, %v336, %v337
        %v339 = vrot.slane %v200, 2
        %v340 = vsel %vm335, %v337, %v339
        %v341 = vrot.slane %v201, 2
        %v342 = vrot.slane %v202, 2
        %v343 = vsel %vm335, %v341, %v342
        %v344 = vrot.slane %v203, 2
        %v345 = vsel %vm335, %v342, %v344
        %v346 = vrot.slane %v204, 2
        %v347 = vrot.slane %v205, 2
        %v348 = vsel %vm335, %v346, %v347
        %v349 = vrot.slane %v206, 2
        %v350 = vsel %vm335, %v347, %v349
        %v351 = vrot.slane %v207, 2
        %v352 = vrot.slane %v208, 2
        %v353 = vsel %vm335, %v351, %v352
        %v354 = vrot.slane %v209, 2
        %v355 = vsel %vm335, %v352, %v354
        %v356 = vrot.slane %v210, 2
        %v357 = vrot.slane %v211, 2
        %v358 = vsel %vm335, %v356, %v357
        %v359 = vrot.slane %v212, 2
        %v360 = vsel %vm335, %v357, %v359
        %v361 = vrot.slane %v213, 2
        %v362 = vrot.slane %v214, 2
        %v363 = vsel %vm335, %v361, %v362
        %v364 = vrot.slane %v215, 2
        %v365 = vsel %vm335, %v362, %v364
        %v366 = vrot.slane %v216, 2
        %v367 = vrot.slane %v217, 2
        %v368 = vsel %vm335, %v366, %v367
        %v369 = vrot.slane %v218, 2
        %v370 = vsel %vm335, %v367, %v369
        %v371 = vrot.slane %v219, 2
        %v372 = vrot.slane %v220, 2
        %v373 = vsel %vm335, %v371, %v372
        %v374 = vrot.slane %v221, 2
        %v375 = vsel %vm335, %v372, %v374
        %392 = vst [vmem:[#allocation2 + $0x10] sm:$0xff] %v338
        %393 = vst [vmem:[#allocation2 + $0x58] sm:$0xff] %v340
        %394 = vst [vmem:[#allocation2 + $0xa0] sm:$0xff] %v343
        %395 = vst [vmem:[#allocation2 + $0xe8] sm:$0xff] %v345
        %396 = vst [vmem:[#allocation2 + $0x130] sm:$0xff] %v348
        %397 = vst [vmem:[#allocation2 + $0x178] sm:$0xff] %v350
        %398 = vst [vmem:[#allocation2 + $0x1c0] sm:$0xff] %v353
        %399 = vst [vmem:[#allocation2 + $0x208] sm:$0xff] %v355
        %400 = vst [vmem:[#allocation2 + $0x250] sm:$0xff] %v358
        %401 = vst [vmem:[#allocation2 + $0x298] sm:$0xff] %v360
        %402 = vst [vmem:[#allocation2 + $0x2e0] sm:$0xff] %v363
        %403 = vst [vmem:[#allocation2 + $0x328] sm:$0xff] %v365
        %404 = vst [vmem:[#allocation2 + $0x370] sm:$0xff] %v368
        %405 = vst [vmem:[#allocation2 + $0x3b8] sm:$0xff] %v370
        %406 = vst [vmem:[#allocation2 + $0x400] sm:$0xff] %v373
        %407 = vst [vmem:[#allocation2 + $0x448] sm:$0xff] %v375
        %s408 = scalar_lea.vmem %s194, 24
        %v409 = vld [vmem:[%s408] sm:$0xff]
        %v410 = vld [vmem:[%s408 + $0x8] sm:$0xff]
        %v411 = vld [vmem:[%s408 + $0x10] sm:$0x3]
        %v412 = vld [vmem:[%s408 + $0x18] sm:$0xff]
        %v413 = vld [vmem:[%s408 + $0x20] sm:$0xff]
        %v414 = vld [vmem:[%s408 + $0x28] sm:$0x3]
        %v415 = vld [vmem:[%s408 + $0x30] sm:$0xff]
        %v416 = vld [vmem:[%s408 + $0x38] sm:$0xff]
        %v417 = vld [vmem:[%s408 + $0x40] sm:$0x3]
        %v418 = vld [vmem:[%s408 + $0x48] sm:$0xff]
        %v419 = vld [vmem:[%s408 + $0x50] sm:$0xff]
        %v420 = vld [vmem:[%s408 + $0x58] sm:$0x3]
        %v421 = vld [vmem:[%s408 + $0x60] sm:$0xff]
        %v422 = vld [vmem:[%s408 + $0x68] sm:$0xff]
        %v423 = vld [vmem:[%s408 + $0x70] sm:$0x3]
        %v424 = vld [vmem:[%s408 + $0x78] sm:$0xff]
        %v425 = vld [vmem:[%s408 + $0x80] sm:$0xff]
        %v426 = vld [vmem:[%s408 + $0x88] sm:$0x3]
        %v427 = vld [vmem:[%s408 + $0x90] sm:$0xff]
        %v428 = vld [vmem:[%s408 + $0x98] sm:$0xff]
        %v429 = vld [vmem:[%s408 + $0xa0] sm:$0x3]
        %v430 = vld [vmem:[%s408 + $0xa8] sm:$0xff]
        %v431 = vld [vmem:[%s408 + $0xb0] sm:$0xff]
        %v432 = vld [vmem:[%s408 + $0xb8] sm:$0x3]
        %433 = vst [vmem:[#allocation2 + $0x18] sm:$0xff] %v409
        %434 = vst [vmem:[#allocation2 + $0x60] sm:$0xff] %v410
        %435 = vst [vmem:[#allocation2 + $0xa8] sm:$0xff] %v412
        %436 = vst [vmem:[#allocation2 + $0xf0] sm:$0xff] %v413
        %437 = vst [vmem:[#allocation2 + $0x138] sm:$0xff] %v415
        %438 = vst [vmem:[#allocation2 + $0x180] sm:$0xff] %v416
        %439 = vst [vmem:[#allocation2 + $0x1c8] sm:$0xff] %v418
        %440 = vst [vmem:[#allocation2 + $0x210] sm:$0xff] %v419
        %441 = vst [vmem:[#allocation2 + $0x258] sm:$0xff] %v421
        %442 = vst [vmem:[#allocation2 + $0x2a0] sm:$0xff] %v422
        %443 = vst [vmem:[#allocation2 + $0x2e8] sm:$0xff] %v424
        %444 = vst [vmem:[#allocation2 + $0x330] sm:$0xff] %v425
        %445 = vst [vmem:[#allocation2 + $0x378] sm:$0xff] %v427
        %446 = vst [vmem:[#allocation2 + $0x3c0] sm:$0xff] %v428
        %447 = vst [vmem:[#allocation2 + $0x408] sm:$0xff] %v430
        %448 = vst [vmem:[#allocation2 + $0x450] sm:$0xff] %v431
        %v473 = vrot.slane %v409, 1
        %v474 = vrot.slane %v410, 1
        %v475 = vsel %vm262, %v473, %v474
        %v476 = vrot.slane %v411, 1
        %v477 = vsel %vm262, %v474, %v476
        %v478 = vrot.slane %v412, 1
        %v479 = vrot.slane %v413, 1
        %v480 = vsel %vm262, %v478, %v479
        %v481 = vrot.slane %v414, 1
        %v482 = vsel %vm262, %v479, %v481
        %v483 = vrot.slane %v415, 1
        %v484 = vrot.slane %v416, 1
        %v485 = vsel %vm262, %v483, %v484
        %v486 = vrot.slane %v417, 1
        %v487 = vsel %vm262, %v484, %v486
        %v488 = vrot.slane %v418, 1
        %v489 = vrot.slane %v419, 1
        %v490 = vsel %vm262, %v488, %v489
        %v491 = vrot.slane %v420, 1
        %v492 = vsel %vm262, %v489, %v491
        %v493 = vrot.slane %v421, 1
        %v494 = vrot.slane %v422, 1
        %v495 = vsel %vm262, %v493, %v494
        %v496 = vrot.slane %v423, 1
        %v497 = vsel %vm262, %v494, %v496
        %v498 = vrot.slane %v424, 1
        %v499 = vrot.slane %v425, 1
        %v500 = vsel %vm262, %v498, %v499
        %v501 = vrot.slane %v426, 1
        %v502 = vsel %vm262, %v499, %v501
        %v503 = vrot.slane %v427, 1
        %v504 = vrot.slane %v428, 1
        %v505 = vsel %vm262, %v503, %v504
        %v506 = vrot.slane %v429, 1
        %v507 = vsel %vm262, %v504, %v506
        %v508 = vrot.slane %v430, 1
        %v509 = vrot.slane %v431, 1
        %v510 = vsel %vm262, %v508, %v509
        %v511 = vrot.slane %v432, 1
        %v512 = vsel %vm262, %v509, %v511
        %529 = vst [vmem:[#allocation2 + $0x20] sm:$0xff] %v475
        %530 = vst [vmem:[#allocation2 + $0x68] sm:$0xff] %v477
        %531 = vst [vmem:[#allocation2 + $0xb0] sm:$0xff] %v480
        %532 = vst [vmem:[#allocation2 + $0xf8] sm:$0xff] %v482
        %533 = vst [vmem:[#allocation2 + $0x140] sm:$0xff] %v485
        %534 = vst [vmem:[#allocation2 + $0x188] sm:$0xff] %v487
        %535 = vst [vmem:[#allocation2 + $0x1d0] sm:$0xff] %v490
        %536 = vst [vmem:[#allocation2 + $0x218] sm:$0xff] %v492
        %537 = vst [vmem:[#allocation2 + $0x260] sm:$0xff] %v495
        %538 = vst [vmem:[#allocation2 + $0x2a8] sm:$0xff] %v497
        %539 = vst [vmem:[#allocation2 + $0x2f0] sm:$0xff] %v500
        %540 = vst [vmem:[#allocation2 + $0x338] sm:$0xff] %v502
        %541 = vst [vmem:[#allocation2 + $0x380] sm:$0xff] %v505
        %542 = vst [vmem:[#allocation2 + $0x3c8] sm:$0xff] %v507
        %543 = vst [vmem:[#allocation2 + $0x410] sm:$0xff] %v510
        %544 = vst [vmem:[#allocation2 + $0x458] sm:$0xff] %v512
        %v545 = vrot.slane %v409, 2
        %v546 = vrot.slane %v410, 2
        %v547 = vsel %vm335, %v545, %v546
        %v548 = vrot.slane %v411, 2
        %v549 = vsel %vm335, %v546, %v548
        %v550 = vrot.slane %v412, 2
        %v551 = vrot.slane %v413, 2
        %v552 = vsel %vm335, %v550, %v551
        %v553 = vrot.slane %v414, 2
        %v554 = vsel %vm335, %v551, %v553
        %v555 = vrot.slane %v415, 2
        %v556 = vrot.slane %v416, 2
        %v557 = vsel %vm335, %v555, %v556
        %v558 = vrot.slane %v417, 2
        %v559 = vsel %vm335, %v556, %v558
        %v560 = vrot.slane %v418, 2
        %v561 = vrot.slane %v419, 2
        %v562 = vsel %vm335, %v560, %v561
        %v563 = vrot.slane %v420, 2
        %v564 = vsel %vm335, %v561, %v563
        %v565 = vrot.slane %v421, 2
        %v566 = vrot.slane %v422, 2
        %v567 = vsel %vm335, %v565, %v566
        %v568 = vrot.slane %v423, 2
        %v569 = vsel %vm335, %v566, %v568
        %v570 = vrot.slane %v424, 2
        %v571 = vrot.slane %v425, 2
        %v572 = vsel %vm335, %v570, %v571
        %v573 = vrot.slane %v426, 2
        %v574 = vsel %vm335, %v571, %v573
        %v575 = vrot.slane %v427, 2
        %v576 = vrot.slane %v428, 2
        %v577 = vsel %vm335, %v575, %v576
        %v578 = vrot.slane %v429, 2
        %v579 = vsel %vm335, %v576, %v578
        %v580 = vrot.slane %v430, 2
        %v581 = vrot.slane %v431, 2
        %v582 = vsel %vm335, %v580, %v581
        %v583 = vrot.slane %v432, 2
        %v584 = vsel %vm335, %v581, %v583
        %601 = vst [vmem:[#allocation2 + $0x28] sm:$0xff] %v547
        %602 = vst [vmem:[#allocation2 + $0x70] sm:$0xff] %v549
        %603 = vst [vmem:[#allocation2 + $0xb8] sm:$0xff] %v552
        %604 = vst [vmem:[#allocation2 + $0x100] sm:$0xff] %v554
        %605 = vst [vmem:[#allocation2 + $0x148] sm:$0xff] %v557
        %606 = vst [vmem:[#allocation2 + $0x190] sm:$0xff] %v559
        %607 = vst [vmem:[#allocation2 + $0x1d8] sm:$0xff] %v562
        %608 = vst [vmem:[#allocation2 + $0x220] sm:$0xff] %v564
        %609 = vst [vmem:[#allocation2 + $0x268] sm:$0xff] %v567
        %610 = vst [vmem:[#allocation2 + $0x2b0] sm:$0xff] %v569
        %611 = vst [vmem:[#allocation2 + $0x2f8] sm:$0xff] %v572
        %612 = vst [vmem:[#allocation2 + $0x340] sm:$0xff] %v574
        %613 = vst [vmem:[#allocation2 + $0x388] sm:$0xff] %v577
        %614 = vst [vmem:[#allocation2 + $0x3d0] sm:$0xff] %v579
        %615 = vst [vmem:[#allocation2 + $0x418] sm:$0xff] %v582
        %616 = vst [vmem:[#allocation2 + $0x460] sm:$0xff] %v584
        %s617 = scalar_lea.vmem %s194, 48
        %v618 = vld [vmem:[%s617] sm:$0xff]
        %v619 = vld [vmem:[%s617 + $0x8] sm:$0xff]
        %v620 = vld [vmem:[%s617 + $0x10] sm:$0x3]
        %v621 = vld [vmem:[%s617 + $0x18] sm:$0xff]
        %v622 = vld [vmem:[%s617 + $0x20] sm:$0xff]
        %v623 = vld [vmem:[%s617 + $0x28] sm:$0x3]
        %v624 = vld [vmem:[%s617 + $0x30] sm:$0xff]
        %v625 = vld [vmem:[%s617 + $0x38] sm:$0xff]
        %v626 = vld [vmem:[%s617 + $0x40] sm:$0x3]
        %v627 = vld [vmem:[%s617 + $0x48] sm:$0xff]
        %v628 = vld [vmem:[%s617 + $0x50] sm:$0xff]
        %v629 = vld [vmem:[%s617 + $0x58] sm:$0x3]
        %v630 = vld [vmem:[%s617 + $0x60] sm:$0xff]
        %v631 = vld [vmem:[%s617 + $0x68] sm:$0xff]
        %v632 = vld [vmem:[%s617 + $0x70] sm:$0x3]
        %v633 = vld [vmem:[%s617 + $0x78] sm:$0xff]
        %v634 = vld [vmem:[%s617 + $0x80] sm:$0xff]
        %v635 = vld [vmem:[%s617 + $0x88] sm:$0x3]
        %v636 = vld [vmem:[%s617 + $0x90] sm:$0xff]
        %v637 = vld [vmem:[%s617 + $0x98] sm:$0xff]
        %v638 = vld [vmem:[%s617 + $0xa0] sm:$0x3]
        %v639 = vld [vmem:[%s617 + $0xa8] sm:$0xff]
        %v640 = vld [vmem:[%s617 + $0xb0] sm:$0xff]
        %v641 = vld [vmem:[%s617 + $0xb8] sm:$0x3]
        %642 = vst [vmem:[#allocation2 + $0x30] sm:$0xff] %v618
        %643 = vst [vmem:[#allocation2 + $0x78] sm:$0xff] %v619
        %644 = vst [vmem:[#allocation2 + $0xc0] sm:$0xff] %v621
        %645 = vst [vmem:[#allocation2 + $0x108] sm:$0xff] %v622
        %646 = vst [vmem:[#allocation2 + $0x150] sm:$0xff] %v624
        %647 = vst [vmem:[#allocation2 + $0x198] sm:$0xff] %v625
        %648 = vst [vmem:[#allocation2 + $0x1e0] sm:$0xff] %v627
        %649 = vst [vmem:[#allocation2 + $0x228] sm:$0xff] %v628
        %650 = vst [vmem:[#allocation2 + $0x270] sm:$0xff] %v630
        %651 = vst [vmem:[#allocation2 + $0x2b8] sm:$0xff] %v631
        %652 = vst [vmem:[#allocation2 + $0x300] sm:$0xff] %v633
        %653 = vst [vmem:[#allocation2 + $0x348] sm:$0xff] %v634
        %654 = vst [vmem:[#allocation2 + $0x390] sm:$0xff] %v636
        %655 = vst [vmem:[#allocation2 + $0x3d8] sm:$0xff] %v637
        %656 = vst [vmem:[#allocation2 + $0x420] sm:$0xff] %v639
        %657 = vst [vmem:[#allocation2 + $0x468] sm:$0xff] %v640
        %v682 = vrot.slane %v618, 1
        %v683 = vrot.slane %v619, 1
        %v684 = vsel %vm262, %v682, %v683
        %v685 = vrot.slane %v620, 1
        %v686 = vsel %vm262, %v683, %v685
        %v687 = vrot.slane %v621, 1
        %v688 = vrot.slane %v622, 1
        %v689 = vsel %vm262, %v687, %v688
        %v690 = vrot.slane %v623, 1
        %v691 = vsel %vm262, %v688, %v690
        %v692 = vrot.slane %v624, 1
        %v693 = vrot.slane %v625, 1
        %v694 = vsel %vm262, %v692, %v693
        %v695 = vrot.slane %v626, 1
        %v696 = vsel %vm262, %v693, %v695
        %v697 = vrot.slane %v627, 1
        %v698 = vrot.slane %v628, 1
        %v699 = vsel %vm262, %v697, %v698
        %v700 = vrot.slane %v629, 1
        %v701 = vsel %vm262, %v698, %v700
        %v702 = vrot.slane %v630, 1
        %v703 = vrot.slane %v631, 1
        %v704 = vsel %vm262, %v702, %v703
        %v705 = vrot.slane %v632, 1
        %v706 = vsel %vm262, %v703, %v705
        %v707 = vrot.slane %v633, 1
        %v708 = vrot.slane %v634, 1
        %v709 = vsel %vm262, %v707, %v708
        %v710 = vrot.slane %v635, 1
        %v711 = vsel %vm262, %v708, %v710
        %v712 = vrot.slane %v636, 1
        %v713 = vrot.slane %v637, 1
        %v714 = vsel %vm262, %v712, %v713
        %v715 = vrot.slane %v638, 1
        %v716 = vsel %vm262, %v713, %v715
        %v717 = vrot.slane %v639, 1
        %v718 = vrot.slane %v640, 1
        %v719 = vsel %vm262, %v717, %v718
        %v720 = vrot.slane %v641, 1
        %v721 = vsel %vm262, %v718, %v720
        %738 = vst [vmem:[#allocation2 + $0x38] sm:$0xff] %v684
        %739 = vst [vmem:[#allocation2 + $0x80] sm:$0xff] %v686
        %740 = vst [vmem:[#allocation2 + $0xc8] sm:$0xff] %v689
        %741 = vst [vmem:[#allocation2 + $0x110] sm:$0xff] %v691
        %742 = vst [vmem:[#allocation2 + $0x158] sm:$0xff] %v694
        %743 = vst [vmem:[#allocation2 + $0x1a0] sm:$0xff] %v696
        %744 = vst [vmem:[#allocation2 + $0x1e8] sm:$0xff] %v699
        %745 = vst [vmem:[#allocation2 + $0x230] sm:$0xff] %v701
        %746 = vst [vmem:[#allocation2 + $0x278] sm:$0xff] %v704
        %747 = vst [vmem:[#allocation2 + $0x2c0] sm:$0xff] %v706
        %748 = vst [vmem:[#allocation2 + $0x308] sm:$0xff] %v709
        %749 = vst [vmem:[#allocation2 + $0x350] sm:$0xff] %v711
        %750 = vst [vmem:[#allocation2 + $0x398] sm:$0xff] %v714
        %751 = vst [vmem:[#allocation2 + $0x3e0] sm:$0xff] %v716
        %752 = vst [vmem:[#allocation2 + $0x428] sm:$0xff] %v719
        %753 = vst [vmem:[#allocation2 + $0x470] sm:$0xff] %v721
        %v754 = vrot.slane %v618, 2
        %v755 = vrot.slane %v619, 2
        %v756 = vsel %vm335, %v754, %v755
        %v757 = vrot.slane %v620, 2
        %v758 = vsel %vm335, %v755, %v757
        %v759 = vrot.slane %v621, 2
        %v760 = vrot.slane %v622, 2
        %v761 = vsel %vm335, %v759, %v760
        %v762 = vrot.slane %v623, 2
        %v763 = vsel %vm335, %v760, %v762
        %v764 = vrot.slane %v624, 2
        %v765 = vrot.slane %v625, 2
        %v766 = vsel %vm335, %v764, %v765
        %v767 = vrot.slane %v626, 2
        %v768 = vsel %vm335, %v765, %v767
        %v769 = vrot.slane %v627, 2
        %v770 = vrot.slane %v628, 2
        %v771 = vsel %vm335, %v769, %v770
        %v772 = vrot.slane %v629, 2
        %v773 = vsel %vm335, %v770, %v772
        %v774 = vrot.slane %v630, 2
        %v775 = vrot.slane %v631, 2
        %v776 = vsel %vm335, %v774, %v775
        %v777 = vrot.slane %v632, 2
        %v778 = vsel %vm335, %v775, %v777
        %v779 = vrot.slane %v633, 2
        %v780 = vrot.slane %v634, 2
        %v781 = vsel %vm335, %v779, %v780
        %v782 = vrot.slane %v635, 2
        %v783 = vsel %vm335, %v780, %v782
        %v784 = vrot.slane %v636, 2
        %v785 = vrot.slane %v637, 2
        %v786 = vsel %vm335, %v784, %v785
        %v787 = vrot.slane %v638, 2
        %v788 = vsel %vm335, %v785, %v787
        %v789 = vrot.slane %v639, 2
        %v790 = vrot.slane %v640, 2
        %v791 = vsel %vm335, %v789, %v790
        %v792 = vrot.slane %v641, 2
        %v793 = vsel %vm335, %v790, %v792
        %810 = vst [vmem:[#allocation2 + $0x40] sm:$0xff] %v756
        %811 = vst [vmem:[#allocation2 + $0x88] sm:$0xff] %v758
        %812 = vst [vmem:[#allocation2 + $0xd0] sm:$0xff] %v761
        %813 = vst [vmem:[#allocation2 + $0x118] sm:$0xff] %v763
        %814 = vst [vmem:[#allocation2 + $0x160] sm:$0xff] %v766
        %815 = vst [vmem:[#allocation2 + $0x1a8] sm:$0xff] %v768
        %816 = vst [vmem:[#allocation2 + $0x1f0] sm:$0xff] %v771
        %817 = vst [vmem:[#allocation2 + $0x238] sm:$0xff] %v773
        %818 = vst [vmem:[#allocation2 + $0x280] sm:$0xff] %v776
        %819 = vst [vmem:[#allocation2 + $0x2c8] sm:$0xff] %v778
        %820 = vst [vmem:[#allocation2 + $0x310] sm:$0xff] %v781
        %821 = vst [vmem:[#allocation2 + $0x358] sm:$0xff] %v783
        %822 = vst [vmem:[#allocation2 + $0x3a0] sm:$0xff] %v786
        %823 = vst [vmem:[#allocation2 + $0x3e8] sm:$0xff] %v788
        %824 = vst [vmem:[#allocation2 + $0x430] sm:$0xff] %v791
        %825 = vst [vmem:[#allocation2 + $0x478] sm:$0xff] %v793
        %v826 = vld [vmem:[#allocation2] sm:$0xff]
        %v827 = vld [vmem:[#allocation2 + $0x8] sm:$0xff]
        %v828 = vld [vmem:[#allocation2 + $0x10] sm:$0xff]
        %v829 = vld [vmem:[#allocation2 + $0x18] sm:$0xff]
        %v830 = vld [vmem:[#allocation2 + $0x20] sm:$0xff]
        %v831 = vld [vmem:[#allocation2 + $0x28] sm:$0xff]
        %v832 = vld [vmem:[#allocation2 + $0x30] sm:$0xff]
        %v833 = vld [vmem:[#allocation2 + $0x38] sm:$0xff]
        %v834 = vld [vmem:[#allocation2 + $0x40] sm:$0xff]
        %v835 = vld [vmem:[#allocation2 + $0x48] sm:$0xff]
        %v836 = vld [vmem:[#allocation2 + $0x50] sm:$0xff]
        %v837 = vld [vmem:[#allocation2 + $0x58] sm:$0xff]
        %v838 = vld [vmem:[#allocation2 + $0x60] sm:$0xff]
        %v839 = vld [vmem:[#allocation2 + $0x68] sm:$0xff]
        %v840 = vld [vmem:[#allocation2 + $0x70] sm:$0xff]
        %v841 = vld [vmem:[#allocation2 + $0x78] sm:$0xff]
        %v842 = vld [vmem:[#allocation2 + $0x80] sm:$0xff]
        %v843 = vld [vmem:[#allocation2 + $0x88] sm:$0xff]
        %v844 = vld [vmem:[#allocation2 + $0x90] sm:$0xff]
        %v845 = vld [vmem:[#allocation2 + $0x98] sm:$0xff]
        %v846 = vld [vmem:[#allocation2 + $0xa0] sm:$0xff]
        %v847 = vld [vmem:[#allocation2 + $0xa8] sm:$0xff]
        %v848 = vld [vmem:[#allocation2 + $0xb0] sm:$0xff]
        %v849 = vld [vmem:[#allocation2 + $0xb8] sm:$0xff]
        %v850 = vld [vmem:[#allocation2 + $0xc0] sm:$0xff]
        %v851 = vld [vmem:[#allocation2 + $0xc8] sm:$0xff]
        %v852 = vld [vmem:[#allocation2 + $0xd0] sm:$0xff]
        %v853 = vld [vmem:[#allocation2 + $0xd8] sm:$0xff]
        %v854 = vld [vmem:[#allocation2 + $0xe0] sm:$0xff]
        %v855 = vld [vmem:[#allocation2 + $0xe8] sm:$0xff]
        %v856 = vld [vmem:[#allocation2 + $0xf0] sm:$0xff]
        %v857 = vld [vmem:[#allocation2 + $0xf8] sm:$0xff]
        %v858 = vld [vmem:[#allocation2 + $0x100] sm:$0xff]
        %v859 = vld [vmem:[#allocation2 + $0x108] sm:$0xff]
        %v860 = vld [vmem:[#allocation2 + $0x110] sm:$0xff]
        %v861 = vld [vmem:[#allocation2 + $0x118] sm:$0xff]
        %v862 = vld [vmem:[#allocation2 + $0x120] sm:$0xff]
        %v863 = vld [vmem:[#allocation2 + $0x128] sm:$0xff]
        %v864 = vld [vmem:[#allocation2 + $0x130] sm:$0xff]
        %v865 = vld [vmem:[#allocation2 + $0x138] sm:$0xff]
        %v866 = vld [vmem:[#allocation2 + $0x140] sm:$0xff]
        %v867 = vld [vmem:[#allocation2 + $0x148] sm:$0xff]
        %v868 = vld [vmem:[#allocation2 + $0x150] sm:$0xff]
        %v869 = vld [vmem:[#allocation2 + $0x158] sm:$0xff]
        %v870 = vld [vmem:[#allocation2 + $0x160] sm:$0xff]
        %v871 = vld [vmem:[#allocation2 + $0x168] sm:$0xff]
        %v872 = vld [vmem:[#allocation2 + $0x170] sm:$0xff]
        %v873 = vld [vmem:[#allocation2 + $0x178] sm:$0xff]
        %v874 = vld [vmem:[#allocation2 + $0x180] sm:$0xff]
        %v875 = vld [vmem:[#allocation2 + $0x188] sm:$0xff]
        %v876 = vld [vmem:[#allocation2 + $0x190] sm:$0xff]
        %v877 = vld [vmem:[#allocation2 + $0x198] sm:$0xff]
        %v878 = vld [vmem:[#allocation2 + $0x1a0] sm:$0xff]
        %v879 = vld [vmem:[#allocation2 + $0x1a8] sm:$0xff]
        %v880 = vld [vmem:[#allocation2 + $0x1b0] sm:$0xff]
        %v881 = vld [vmem:[#allocation2 + $0x1b8] sm:$0xff]
        %v882 = vld [vmem:[#allocation2 + $0x1c0] sm:$0xff]
        %v883 = vld [vmem:[#allocation2 + $0x1c8] sm:$0xff]
        %v884 = vld [vmem:[#allocation2 + $0x1d0] sm:$0xff]
        %v885 = vld [vmem:[#allocation2 + $0x1d8] sm:$0xff]
        %v886 = vld [vmem:[#allocation2 + $0x1e0] sm:$0xff]
        %v887 = vld [vmem:[#allocation2 + $0x1e8] sm:$0xff]
        %v888 = vld [vmem:[#allocation2 + $0x1f0] sm:$0xff]
        %v889 = vld [vmem:[#allocation2 + $0x1f8] sm:$0xff]
        %v890 = vld [vmem:[#allocation2 + $0x200] sm:$0xff]
        %v891 = vld [vmem:[#allocation2 + $0x208] sm:$0xff]
        %v892 = vld [vmem:[#allocation2 + $0x210] sm:$0xff]
        %v893 = vld [vmem:[#allocation2 + $0x218] sm:$0xff]
        %v894 = vld [vmem:[#allocation2 + $0x220] sm:$0xff]
        %v895 = vld [vmem:[#allocation2 + $0x228] sm:$0xff]
        %v896 = vld [vmem:[#allocation2 + $0x230] sm:$0xff]
        %v897 = vld [vmem:[#allocation2 + $0x238] sm:$0xff]
        %v898 = vld [vmem:[#allocation2 + $0x240] sm:$0xff]
        %v899 = vld [vmem:[#allocation2 + $0x248] sm:$0xff]
        %v900 = vld [vmem:[#allocation2 + $0x250] sm:$0xff]
        %v901 = vld [vmem:[#allocation2 + $0x258] sm:$0xff]
        %v902 = vld [vmem:[#allocation2 + $0x260] sm:$0xff]
        %v903 = vld [vmem:[#allocation2 + $0x268] sm:$0xff]
        %v904 = vld [vmem:[#allocation2 + $0x270] sm:$0xff]
        %v905 = vld [vmem:[#allocation2 + $0x278] sm:$0xff]
        %v906 = vld [vmem:[#allocation2 + $0x280] sm:$0xff]
        %v907 = vld [vmem:[#allocation2 + $0x288] sm:$0xff]
        %v908 = vld [vmem:[#allocation2 + $0x290] sm:$0xff]
        %v909 = vld [vmem:[#allocation2 + $0x298] sm:$0xff]
        %v910 = vld [vmem:[#allocation2 + $0x2a0] sm:$0xff]
        %v911 = vld [vmem:[#allocation2 + $0x2a8] sm:$0xff]
        %v912 = vld [vmem:[#allocation2 + $0x2b0] sm:$0xff]
        %v913 = vld [vmem:[#allocation2 + $0x2b8] sm:$0xff]
        %v914 = vld [vmem:[#allocation2 + $0x2c0] sm:$0xff]
        %v915 = vld [vmem:[#allocation2 + $0x2c8] sm:$0xff]
        %v916 = vld [vmem:[#allocation2 + $0x2d0] sm:$0xff]
        %v917 = vld [vmem:[#allocation2 + $0x2d8] sm:$0xff]
        %v918 = vld [vmem:[#allocation2 + $0x2e0] sm:$0xff]
        %v919 = vld [vmem:[#allocation2 + $0x2e8] sm:$0xff]
        %v920 = vld [vmem:[#allocation2 + $0x2f0] sm:$0xff]
        %v921 = vld [vmem:[#allocation2 + $0x2f8] sm:$0xff]
        %v922 = vld [vmem:[#allocation2 + $0x300] sm:$0xff]
        %v923 = vld [vmem:[#allocation2 + $0x308] sm:$0xff]
        %v924 = vld [vmem:[#allocation2 + $0x310] sm:$0xff]
        %v925 = vld [vmem:[#allocation2 + $0x318] sm:$0xff]
        %v926 = vld [vmem:[#allocation2 + $0x320] sm:$0xff]
        %v927 = vld [vmem:[#allocation2 + $0x328] sm:$0xff]
        %v928 = vld [vmem:[#allocation2 + $0x330] sm:$0xff]
        %v929 = vld [vmem:[#allocation2 + $0x338] sm:$0xff]
        %v930 = vld [vmem:[#allocation2 + $0x340] sm:$0xff]
        %v931 = vld [vmem:[#allocation2 + $0x348] sm:$0xff]
        %v932 = vld [vmem:[#allocation2 + $0x350] sm:$0xff]
        %v933 = vld [vmem:[#allocation2 + $0x358] sm:$0xff]
        %v934 = vld [vmem:[#allocation2 + $0x360] sm:$0xff]
        %v935 = vld [vmem:[#allocation2 + $0x368] sm:$0xff]
        %v936 = vld [vmem:[#allocation2 + $0x370] sm:$0xff]
        %v937 = vld [vmem:[#allocation2 + $0x378] sm:$0xff]
        %v938 = vld [vmem:[#allocation2 + $0x380] sm:$0xff]
        %v939 = vld [vmem:[#allocation2 + $0x388] sm:$0xff]
        %v940 = vld [vmem:[#allocation2 + $0x390] sm:$0xff]
        %v941 = vld [vmem:[#allocation2 + $0x398] sm:$0xff]
        %v942 = vld [vmem:[#allocation2 + $0x3a0] sm:$0xff]
        %v943 = vld [vmem:[#allocation2 + $0x3a8] sm:$0xff]
        %v944 = vld [vmem:[#allocation2 + $0x3b0] sm:$0xff]
        %v945 = vld [vmem:[#allocation2 + $0x3b8] sm:$0xff]
        %v946 = vld [vmem:[#allocation2 + $0x3c0] sm:$0xff]
        %v947 = vld [vmem:[#allocation2 + $0x3c8] sm:$0xff]
        %v948 = vld [vmem:[#allocation2 + $0x3d0] sm:$0xff]
        %v949 = vld [vmem:[#allocation2 + $0x3d8] sm:$0xff]
        %v950 = vld [vmem:[#allocation2 + $0x3e0] sm:$0xff]
        %v951 = vld [vmem:[#allocation2 + $0x3e8] sm:$0xff]
        %v952 = vld [vmem:[#allocation2 + $0x3f0] sm:$0xff]
        %v953 = vld [vmem:[#allocation2 + $0x3f8] sm:$0xff]
        %v954 = vld [vmem:[#allocation2 + $0x400] sm:$0xff]
        %v955 = vld [vmem:[#allocation2 + $0x408] sm:$0xff]
        %v956 = vld [vmem:[#allocation2 + $0x410] sm:$0xff]
        %v957 = vld [vmem:[#allocation2 + $0x418] sm:$0xff]
        %v958 = vld [vmem:[#allocation2 + $0x420] sm:$0xff]
        %v959 = vld [vmem:[#allocation2 + $0x428] sm:$0xff]
        %v960 = vld [vmem:[#allocation2 + $0x430] sm:$0xff]
        %v961 = vld [vmem:[#allocation2 + $0x438] sm:$0xff]
        %v962 = vld [vmem:[#allocation2 + $0x440] sm:$0xff]
        %v963 = vld [vmem:[#allocation2 + $0x448] sm:$0xff]
        %v964 = vld [vmem:[#allocation2 + $0x450] sm:$0xff]
        %v965 = vld [vmem:[#allocation2 + $0x458] sm:$0xff]
        %v966 = vld [vmem:[#allocation2 + $0x460] sm:$0xff]
        %v967 = vld [vmem:[#allocation2 + $0x468] sm:$0xff]
        %v968 = vld [vmem:[#allocation2 + $0x470] sm:$0xff]
        %v969 = vld [vmem:[#allocation2 + $0x478] sm:$0xff]
        %v970 = vld [vmem:[%s1] sm:$0xff]
        %v971 = vld [vmem:[%s1 + $0x8] sm:$0xff]
        %v972 = vld [vmem:[%s1 + $0x10] sm:$0xff]
        %v973 = vld [vmem:[%s1 + $0x18] sm:$0xff]
        %v974 = vld [vmem:[%s1 + $0x20] sm:$0xff]
        %v975 = vld [vmem:[%s1 + $0x28] sm:$0xff]
        %v976 = vld [vmem:[%s1 + $0x30] sm:$0xff]
        %v977 = vld [vmem:[%s1 + $0x38] sm:$0xff]
        %v978 = vld [vmem:[%s1 + $0x40] sm:$0xff]
        %v979 = vld [vmem:[%s1 + $0x48] sm:$0xff]
        %v980 = vld [vmem:[%s1 + $0x50] sm:$0xff]
        %v981 = vld [vmem:[%s1 + $0x58] sm:$0xff]
        %v982 = vld [vmem:[%s1 + $0x60] sm:$0xff]
        %v983 = vld [vmem:[%s1 + $0x68] sm:$0xff]
        %v984 = vld [vmem:[%s1 + $0x70] sm:$0xff]
        %v985 = vld [vmem:[%s1 + $0x78] sm:$0xff]
        %v986 = vld [vmem:[%s1 + $0x80] sm:$0xff]
        %v987 = vld [vmem:[%s1 + $0x88] sm:$0xff]
        %v988 = vld [vmem:[%s1 + $0x90] sm:$0xff]
        %v989 = vld [vmem:[%s1 + $0x98] sm:$0xff]
        %v990 = vld [vmem:[%s1 + $0xa0] sm:$0xff]
        %v991 = vld [vmem:[%s1 + $0xa8] sm:$0xff]
        %v992 = vld [vmem:[%s1 + $0xb0] sm:$0xff]
        %v993 = vld [vmem:[%s1 + $0xb8] sm:$0xff]
        %v994 = vld [vmem:[%s1 + $0xc0] sm:$0xff]
        %v995 = vld [vmem:[%s1 + $0xc8] sm:$0xff]
        %v996 = vld [vmem:[%s1 + $0xd0] sm:$0xff]
        %v997 = vld [vmem:[%s1 + $0xd8] sm:$0xff]
        %v998 = vld [vmem:[%s1 + $0xe0] sm:$0xff]
        %v999 = vld [vmem:[%s1 + $0xe8] sm:$0xff]
        %v1000 = vld [vmem:[%s1 + $0xf0] sm:$0xff]
        %v1001 = vld [vmem:[%s1 + $0xf8] sm:$0xff]
        %v1002 = vld [vmem:[%s1 + $0x100] sm:$0xff]
        %v1003 = vld [vmem:[%s1 + $0x108] sm:$0xff]
        %v1004 = vld [vmem:[%s1 + $0x110] sm:$0xff]
        %v1005 = vld [vmem:[%s1 + $0x118] sm:$0xff]
        %v1006 = vld [vmem:[%s1 + $0x120] sm:$0xff]
        %v1007 = vld [vmem:[%s1 + $0x128] sm:$0xff]
        %v1008 = vld [vmem:[%s1 + $0x130] sm:$0xff]
        %v1009 = vld [vmem:[%s1 + $0x138] sm:$0xff]
        %v1010 = vld [vmem:[%s1 + $0x140] sm:$0xff]
        %v1011 = vld [vmem:[%s1 + $0x148] sm:$0xff]
        %v1012 = vld [vmem:[%s1 + $0x150] sm:$0xff]
        %v1013 = vld [vmem:[%s1 + $0x158] sm:$0xff]
        %v1014 = vld [vmem:[%s1 + $0x160] sm:$0xff]
        %v1015 = vld [vmem:[%s1 + $0x168] sm:$0xff]
        %v1016 = vld [vmem:[%s1 + $0x170] sm:$0xff]
        %v1017 = vld [vmem:[%s1 + $0x178] sm:$0xff]
        %v1018 = vld [vmem:[%s1 + $0x180] sm:$0xff]
        %v1019 = vld [vmem:[%s1 + $0x188] sm:$0xff]
        %v1020 = vld [vmem:[%s1 + $0x190] sm:$0xff]
        %v1021 = vld [vmem:[%s1 + $0x198] sm:$0xff]
        %v1022 = vld [vmem:[%s1 + $0x1a0] sm:$0xff]
        %v1023 = vld [vmem:[%s1 + $0x1a8] sm:$0xff]
        %v1024 = vld [vmem:[%s1 + $0x1b0] sm:$0xff]
        %v1025 = vld [vmem:[%s1 + $0x1b8] sm:$0xff]
        %v1026 = vld [vmem:[%s1 + $0x1c0] sm:$0xff]
        %v1027 = vld [vmem:[%s1 + $0x1c8] sm:$0xff]
        %v1028 = vld [vmem:[%s1 + $0x1d0] sm:$0xff]
        %v1029 = vld [vmem:[%s1 + $0x1d8] sm:$0xff]
        %v1030 = vld [vmem:[%s1 + $0x1e0] sm:$0xff]
        %v1031 = vld [vmem:[%s1 + $0x1e8] sm:$0xff]
        %v1032 = vld [vmem:[%s1 + $0x1f0] sm:$0xff]
        %v1033 = vld [vmem:[%s1 + $0x1f8] sm:$0xff]
        %v1034 = vld [vmem:[%s1 + $0x200] sm:$0xff]
        %v1035 = vld [vmem:[%s1 + $0x208] sm:$0xff]
        %v1036 = vld [vmem:[%s1 + $0x210] sm:$0xff]
        %v1037 = vld [vmem:[%s1 + $0x218] sm:$0xff]
        %v1038 = vld [vmem:[%s1 + $0x220] sm:$0xff]
        %v1039 = vld [vmem:[%s1 + $0x228] sm:$0xff]
        %v1040 = vld [vmem:[%s1 + $0x230] sm:$0xff]
        %v1041 = vld [vmem:[%s1 + $0x238] sm:$0xff]
        %v1042 = vld [vmem:[%s1 + $0x240] sm:$0xff]
        %v1043 = vld [vmem:[%s1 + $0x248] sm:$0xff]
        %v1044 = vld [vmem:[%s1 + $0x250] sm:$0xff]
        %v1045 = vld [vmem:[%s1 + $0x258] sm:$0xff]
        %v1046 = vld [vmem:[%s1 + $0x260] sm:$0xff]
        %v1047 = vld [vmem:[%s1 + $0x268] sm:$0xff]
        %v1048 = vld [vmem:[%s1 + $0x270] sm:$0xff]
        %v1049 = vld [vmem:[%s1 + $0x278] sm:$0xff]
        %v1050 = vld [vmem:[%s1 + $0x280] sm:$0xff]
        %v1051 = vld [vmem:[%s1 + $0x288] sm:$0xff]
        %v1052 = vld [vmem:[%s1 + $0x290] sm:$0xff]
        %v1053 = vld [vmem:[%s1 + $0x298] sm:$0xff]
        %v1054 = vld [vmem:[%s1 + $0x2a0] sm:$0xff]
        %v1055 = vld [vmem:[%s1 + $0x2a8] sm:$0xff]
        %v1056 = vld [vmem:[%s1 + $0x2b0] sm:$0xff]
        %v1057 = vld [vmem:[%s1 + $0x2b8] sm:$0xff]
        %v1058 = vld [vmem:[%s1 + $0x2c0] sm:$0xff]
        %v1059 = vld [vmem:[%s1 + $0x2c8] sm:$0xff]
        %v1060 = vld [vmem:[%s1 + $0x2d0] sm:$0xff]
        %v1061 = vld [vmem:[%s1 + $0x2d8] sm:$0xff]
        %v1062 = vld [vmem:[%s1 + $0x2e0] sm:$0xff]
        %v1063 = vld [vmem:[%s1 + $0x2e8] sm:$0xff]
        %v1064 = vld [vmem:[%s1 + $0x2f0] sm:$0xff]
        %v1065 = vld [vmem:[%s1 + $0x2f8] sm:$0xff]
        %v1066 = vld [vmem:[%s1 + $0x300] sm:$0xff]
        %v1067 = vld [vmem:[%s1 + $0x308] sm:$0xff]
        %v1068 = vld [vmem:[%s1 + $0x310] sm:$0xff]
        %v1069 = vld [vmem:[%s1 + $0x318] sm:$0xff]
        %v1070 = vld [vmem:[%s1 + $0x320] sm:$0xff]
        %v1071 = vld [vmem:[%s1 + $0x328] sm:$0xff]
        %v1072 = vld [vmem:[%s1 + $0x330] sm:$0xff]
        %v1073 = vld [vmem:[%s1 + $0x338] sm:$0xff]
        %v1074 = vld [vmem:[%s1 + $0x340] sm:$0xff]
        %v1075 = vld [vmem:[%s1 + $0x348] sm:$0xff]
        %v1076 = vld [vmem:[%s1 + $0x350] sm:$0xff]
        %v1077 = vld [vmem:[%s1 + $0x358] sm:$0xff]
        %v1078 = vld [vmem:[%s1 + $0x360] sm:$0xff]
        %v1079 = vld [vmem:[%s1 + $0x368] sm:$0xff]
        %v1080 = vld [vmem:[%s1 + $0x370] sm:$0xff]
        %v1081 = vld [vmem:[%s1 + $0x378] sm:$0xff]
        %v1082 = vld [vmem:[%s1 + $0x380] sm:$0xff]
        %v1083 = vld [vmem:[%s1 + $0x388] sm:$0xff]
        %v1084 = vld [vmem:[%s1 + $0x390] sm:$0xff]
        %v1085 = vld [vmem:[%s1 + $0x398] sm:$0xff]
        %v1086 = vld [vmem:[%s1 + $0x3a0] sm:$0xff]
        %v1087 = vld [vmem:[%s1 + $0x3a8] sm:$0xff]
        %v1088 = vld [vmem:[%s1 + $0x3b0] sm:$0xff]
        %v1089 = vld [vmem:[%s1 + $0x3b8] sm:$0xff]
        %v1090 = vld [vmem:[%s1 + $0x3c0] sm:$0xff]
        %v1091 = vld [vmem:[%s1 + $0x3c8] sm:$0xff]
        %v1092 = vld [vmem:[%s1 + $0x3d0] sm:$0xff]
        %v1093 = vld [vmem:[%s1 + $0x3d8] sm:$0xff]
        %v1094 = vld [vmem:[%s1 + $0x3e0] sm:$0xff]
        %v1095 = vld [vmem:[%s1 + $0x3e8] sm:$0xff]
        %v1096 = vld [vmem:[%s1 + $0x3f0] sm:$0xff]
        %v1097 = vld [vmem:[%s1 + $0x3f8] sm:$0xff]
        %v1098 = vld [vmem:[%s1 + $0x400] sm:$0xff]
        %v1099 = vld [vmem:[%s1 + $0x408] sm:$0xff]
        %v1100 = vld [vmem:[%s1 + $0x410] sm:$0xff]
        %v1101 = vld [vmem:[%s1 + $0x418] sm:$0xff]
        %v1102 = vld [vmem:[%s1 + $0x420] sm:$0xff]
        %v1103 = vld [vmem:[%s1 + $0x428] sm:$0xff]
        %v1104 = vld [vmem:[%s1 + $0x430] sm:$0xff]
        %v1105 = vld [vmem:[%s1 + $0x438] sm:$0xff]
        %v1106 = vld [vmem:[%s1 + $0x440] sm:$0xff]
        %v1107 = vld [vmem:[%s1 + $0x448] sm:$0xff]
        %v1108 = vld [vmem:[%s1 + $0x450] sm:$0xff]
        %v1109 = vld [vmem:[%s1 + $0x458] sm:$0xff]
        %v1110 = vld [vmem:[%s1 + $0x460] sm:$0xff]
        %v1111 = vld [vmem:[%s1 + $0x468] sm:$0xff]
        %v1112 = vld [vmem:[%s1 + $0x470] sm:$0xff]
        %v1113 = vld [vmem:[%s1 + $0x478] sm:$0xff]
        %v1114 = vld [vmem:[%s2] sm:$0x1]
        %v1116 = vlaneseq
        %v1117 = vshrl.u32 %v1116, 7
        %v1118 = vsub.s32 0, %v1117
        %v1119 = vrot.slane %v1114, %v1118
        %1121 = vmatprep.subr.mxu0 0.0
        %1122 = vmatpush1.msra.mxu0 %v985
        %1123 = vmatprep.subr.mxu0 0.0
        %1124 = vmatpush1.msra.mxu0 %v984
        %1125 = vmatprep.subr.mxu0 0.0
        %1126 = vmatpush1.msra.mxu0 %v983
        %1127 = vmatprep.subr.mxu0 0.0
        %1128 = vmatpush1.msra.mxu0 %v982
        %1129 = vmatprep.subr.mxu0 0.0
        %1130 = vmatpush1.msra.mxu0 %v981
        %1131 = vmatprep.subr.mxu0 0.0
        %1132 = vmatpush1.msra.mxu0 %v980
        %1133 = vmatprep.subr.mxu0 0.0
        %1134 = vmatpush1.msra.mxu0 %v979
        %1135 = vmatprep.subr.mxu0 0.0
        %1136 = vmatpush1.msra.mxu0 %v978
        %1137 = vmatprep.subr.mxu0 0.0
        %1138 = vmatpush1.msra.mxu0 %v977
        %1139 = vmatprep.subr.mxu0 0.0
        %1140 = vmatpush1.msra.mxu0 %v976
        %1141 = vmatprep.subr.mxu0 0.0
        %1142 = vmatpush1.msra.mxu0 %v975
        %1143 = vmatprep.subr.mxu0 0.0
        %1144 = vmatpush1.msra.mxu0 %v974
        %1145 = vmatprep.subr.mxu0 0.0
        %1146 = vmatpush1.msra.mxu0 %v973
        %1147 = vmatprep.subr.mxu0 0.0
        %1148 = vmatpush1.msra.mxu0 %v972
        %1149 = vmatprep.subr.mxu0 0.0
        %1150 = vmatpush1.msra.mxu0 %v971
        %1151 = vmatprep.subr.mxu0 0.0
        %1152 = vmatpush1.msra.mxu0 %v970
        %1153 = vmatprep.subr.mxu0 0.0
        %1154 = vmatpush2.msra.mxu0 %v1001
        %1155 = vmatprep.subr.mxu0 0.0
        %1156 = vmatpush2.msra.mxu0 %v1000
        %1157 = vmatprep.subr.mxu0 0.0
        %1158 = vmatpush2.msra.mxu0 %v999
        %1159 = vmatprep.subr.mxu0 0.0
        %1160 = vmatpush2.msra.mxu0 %v998
        %1161 = vmatprep.subr.mxu0 0.0
        %1162 = vmatpush2.msra.mxu0 %v997
        %1163 = vmatprep.subr.mxu0 0.0
        %1164 = vmatpush2.msra.mxu0 %v996
        %1165 = vmatprep.subr.mxu0 0.0
        %1166 = vmatpush2.msra.mxu0 %v995
        %1167 = vmatprep.subr.mxu0 0.0
        %1168 = vmatpush2.msra.mxu0 %v994
        %1169 = vmatprep.subr.mxu0 0.0
        %1170 = vmatpush2.msra.mxu0 %v993
        %1171 = vmatprep.subr.mxu0 0.0
        %1172 = vmatpush2.msra.mxu0 %v992
        %1173 = vmatprep.subr.mxu0 0.0
        %1174 = vmatpush2.msra.mxu0 %v991
        %1175 = vmatprep.subr.mxu0 0.0
        %1176 = vmatpush2.msra.mxu0 %v990
        %1177 = vmatprep.subr.mxu0 0.0
        %1178 = vmatpush2.msra.mxu0 %v989
        %1179 = vmatprep.subr.mxu0 0.0
        %1180 = vmatpush2.msra.mxu0 %v988
        %1181 = vmatprep.subr.mxu0 0.0
        %1182 = vmatpush2.msra.mxu0 %v987
        %1183 = vmatprep.subr.mxu0 0.0
        %1184 = vmatpush2.msra.mxu0 %v986
        %1185 = vmatprep.mubr.f32.mxu0 %v827
        %1186 = vmatmul.mubr.f32.gmra.mxu0 %v826
        %v1187 = vpop.f32.mrf.mxu0
        %v1188 = vadd.f32 %v1119, %v1187
        %v1189 = vpop.f32.mrf.mxu0
        %1190 = vmatprep.mubr.f32.mxu0 %v836
        %1191 = vmatmul.mubr.f32.gmra.mxu0 %v835
        %v1192 = vpop.f32.mrf.mxu0
        %v1193 = vadd.f32 %v1119, %v1192
        %v1194 = vpop.f32.mrf.mxu0
        %1195 = vmatprep.mubr.f32.mxu0 %v845
        %1196 = vmatmul.mubr.f32.gmra.mxu0 %v844
        %v1197 = vpop.f32.mrf.mxu0
        %v1198 = vadd.f32 %v1119, %v1197
        %v1199 = vpop.f32.mrf.mxu0
        %1200 = vmatprep.mubr.f32.mxu0 %v854
        %1201 = vmatmul.mubr.f32.gmra.mxu0 %v853
        %v1202 = vpop.f32.mrf.mxu0
        %v1203 = vadd.f32 %v1119, %v1202
        %v1204 = vpop.f32.mrf.mxu0
        %1205 = vmatprep.mubr.f32.mxu0 %v863
        %1206 = vmatmul.mubr.f32.gmra.mxu0 %v862
        %v1207 = vpop.f32.mrf.mxu0
        %v1208 = vadd.f32 %v1119, %v1207
        %v1209 = vpop.f32.mrf.mxu0
        %1210 = vmatprep.mubr.f32.mxu0 %v872
        %1211 = vmatmul.mubr.f32.gmra.mxu0 %v871
        %v1212 = vpop.f32.mrf.mxu0
        %v1213 = vadd.f32 %v1119, %v1212
        %v1214 = vpop.f32.mrf.mxu0
        %1215 = vmatprep.mubr.f32.mxu0 %v881
        %1216 = vmatmul.mubr.f32.gmra.mxu0 %v880
        %v1217 = vpop.f32.mrf.mxu0
        %v1218 = vadd.f32 %v1119, %v1217
        %v1219 = vpop.f32.mrf.mxu0
        %1220 = vmatprep.mubr.f32.mxu0 %v890
        %1221 = vmatmul.mubr.f32.gmra.mxu0 %v889
        %v1222 = vpop.f32.mrf.mxu0
        %v1223 = vadd.f32 %v1119, %v1222
        %v1224 = vpop.f32.mrf.mxu0
        %1225 = vmatprep.mubr.f32.mxu0 %v899
        %1226 = vmatmul.mubr.f32.gmra.mxu0 %v898
        %v1227 = vpop.f32.mrf.mxu0
        %v1228 = vadd.f32 %v1119, %v1227
        %v1229 = vpop.f32.mrf.mxu0
        %1230 = vmatprep.mubr.f32.mxu0 %v908
        %1231 = vmatmul.mubr.f32.gmra.mxu0 %v907
        %v1232 = vpop.f32.mrf.mxu0
        %v1233 = vadd.f32 %v1119, %v1232
        %v1234 = vpop.f32.mrf.mxu0
        %1235 = vmatprep.mubr.f32.mxu0 %v917
        %1236 = vmatmul.mubr.f32.gmra.mxu0 %v916
        %v1237 = vpop.f32.mrf.mxu0
        %v1238 = vadd.f32 %v1119, %v1237
        %v1239 = vpop.f32.mrf.mxu0
        %1240 = vmatprep.mubr.f32.mxu0 %v926
        %1241 = vmatmul.mubr.f32.gmra.mxu0 %v925
        %v1242 = vpop.f32.mrf.mxu0
        %v1243 = vadd.f32 %v1119, %v1242
        %v1244 = vpop.f32.mrf.mxu0
        %1245 = vmatprep.mubr.f32.mxu0 %v935
        %1246 = vmatmul.mubr.f32.gmra.mxu0 %v934
        %v1247 = vpop.f32.mrf.mxu0
        %v1248 = vadd.f32 %v1119, %v1247
        %v1249 = vpop.f32.mrf.mxu0
        %1250 = vmatprep.mubr.f32.mxu0 %v944
        %1251 = vmatmul.mubr.f32.gmra.mxu0 %v943
        %v1252 = vpop.f32.mrf.mxu0
        %v1253 = vadd.f32 %v1119, %v1252
        %v1254 = vpop.f32.mrf.mxu0
        %1255 = vmatprep.mubr.f32.mxu0 %v953
        %1256 = vmatmul.mubr.f32.gmra.mxu0 %v952
        %v1257 = vpop.f32.mrf.mxu0
        %v1258 = vadd.f32 %v1119, %v1257
        %v1259 = vpop.f32.mrf.mxu0
        %1260 = vmatprep.mubr.f32.mxu0 %v962
        %1261 = vmatmul.mubr.f32.gmra.mxu0 %v961
        %v1262 = vpop.f32.mrf.mxu0
        %v1263 = vadd.f32 %v1119, %v1262
        %v1264 = vpop.f32.mrf.mxu0
        %1265 = vdwg.mxu0
        %1266 = vmatprep.subr.mxu0 0.0
        %1267 = vmatpush1.msra.mxu0 %v1017
        %1268 = vmatprep.subr.mxu0 0.0
        %1269 = vmatpush1.msra.mxu0 %v1016
        %1270 = vmatprep.subr.mxu0 0.0
        %1271 = vmatpush1.msra.mxu0 %v1015
        %1272 = vmatprep.subr.mxu0 0.0
        %1273 = vmatpush1.msra.mxu0 %v1014
        %1274 = vmatprep.subr.mxu0 0.0
        %1275 = vmatpush1.msra.mxu0 %v1013
        %1276 = vmatprep.subr.mxu0 0.0
        %1277 = vmatpush1.msra.mxu0 %v1012
        %1278 = vmatprep.subr.mxu0 0.0
        %1279 = vmatpush1.msra.mxu0 %v1011
        %1280 = vmatprep.subr.mxu0 0.0
        %1281 = vmatpush1.msra.mxu0 %v1010
        %1282 = vmatprep.subr.mxu0 0.0
        %1283 = vmatpush1.msra.mxu0 %v1009
        %1284 = vmatprep.subr.mxu0 0.0
        %1285 = vmatpush1.msra.mxu0 %v1008
        %1286 = vmatprep.subr.mxu0 0.0
        %1287 = vmatpush1.msra.mxu0 %v1007
        %1288 = vmatprep.subr.mxu0 0.0
        %1289 = vmatpush1.msra.mxu0 %v1006
        %1290 = vmatprep.subr.mxu0 0.0
        %1291 = vmatpush1.msra.mxu0 %v1005
        %1292 = vmatprep.subr.mxu0 0.0
        %1293 = vmatpush1.msra.mxu0 %v1004
        %1294 = vmatprep.subr.mxu0 0.0
        %1295 = vmatpush1.msra.mxu0 %v1003
        %1296 = vmatprep.subr.mxu0 0.0
        %1297 = vmatpush1.msra.mxu0 %v1002
        %1298 = vmatprep.subr.mxu0 0.0
        %1299 = vmatpush2.msra.mxu0 %v1033
        %1300 = vmatprep.subr.mxu0 0.0
        %1301 = vmatpush2.msra.mxu0 %v1032
        %1302 = vmatprep.subr.mxu0 0.0
        %1303 = vmatpush2.msra.mxu0 %v1031
        %1304 = vmatprep.subr.mxu0 0.0
        %1305 = vmatpush2.msra.mxu0 %v1030
        %1306 = vmatprep.subr.mxu0 0.0
        %1307 = vmatpush2.msra.mxu0 %v1029
        %1308 = vmatprep.subr.mxu0 0.0
        %1309 = vmatpush2.msra.mxu0 %v1028
        %1310 = vmatprep.subr.mxu0 0.0
        %1311 = vmatpush2.msra.mxu0 %v1027
        %1312 = vmatprep.subr.mxu0 0.0
        %1313 = vmatpush2.msra.mxu0 %v1026
        %1314 = vmatprep.subr.mxu0 0.0
        %1315 = vmatpush2.msra.mxu0 %v1025
        %1316 = vmatprep.subr.mxu0 0.0
        %1317 = vmatpush2.msra.mxu0 %v1024
        %1318 = vmatprep.subr.mxu0 0.0
        %1319 = vmatpush2.msra.mxu0 %v1023
        %1320 = vmatprep.subr.mxu0 0.0
        %1321 = vmatpush2.msra.mxu0 %v1022
        %1322 = vmatprep.subr.mxu0 0.0
        %1323 = vmatpush2.msra.mxu0 %v1021
        %1324 = vmatprep.subr.mxu0 0.0
        %1325 = vmatpush2.msra.mxu0 %v1020
        %1326 = vmatprep.subr.mxu0 0.0
        %1327 = vmatpush2.msra.mxu0 %v1019
        %1328 = vmatprep.subr.mxu0 0.0
        %1329 = vmatpush2.msra.mxu0 %v1018
        %1330 = vmatprep.mubr.f32.mxu0 %v829
        %1331 = vmatmul.mubr.f32.gmra.mxu0 %v828
        %v1332 = vpop.f32.mrf.mxu0
        %v1333 = vadd.f32 %v1188, %v1332
        %v1334 = vpop.f32.mrf.mxu0
        %1335 = vmatprep.mubr.f32.mxu0 %v838
        %1336 = vmatmul.mubr.f32.gmra.mxu0 %v837
        %v1337 = vpop.f32.mrf.mxu0
        %v1338 = vadd.f32 %v1193, %v1337
        %v1339 = vpop.f32.mrf.mxu0
        %1340 = vmatprep.mubr.f32.mxu0 %v847
        %1341 = vmatmul.mubr.f32.gmra.mxu0 %v846
        %v1342 = vpop.f32.mrf.mxu0
        %v1343 = vadd.f32 %v1198, %v1342
        %v1344 = vpop.f32.mrf.mxu0
        %1345 = vmatprep.mubr.f32.mxu0 %v856
        %1346 = vmatmul.mubr.f32.gmra.mxu0 %v855
        %v1347 = vpop.f32.mrf.mxu0
        %v1348 = vadd.f32 %v1203, %v1347
        %v1349 = vpop.f32.mrf.mxu0
        %1350 = vmatprep.mubr.f32.mxu0 %v865
        %1351 = vmatmul.mubr.f32.gmra.mxu0 %v864
        %v1352 = vpop.f32.mrf.mxu0
        %v1353 = vadd.f32 %v1208, %v1352
        %v1354 = vpop.f32.mrf.mxu0
        %1355 = vmatprep.mubr.f32.mxu0 %v874
        %1356 = vmatmul.mubr.f32.gmra.mxu0 %v873
        %v1357 = vpop.f32.mrf.mxu0
        %v1358 = vadd.f32 %v1213, %v1357
        %v1359 = vpop.f32.mrf.mxu0
        %1360 = vmatprep.mubr.f32.mxu0 %v883
        %1361 = vmatmul.mubr.f32.gmra.mxu0 %v882
        %v1362 = vpop.f32.mrf.mxu0
        %v1363 = vadd.f32 %v1218, %v1362
        %v1364 = vpop.f32.mrf.mxu0
        %1365 = vmatprep.mubr.f32.mxu0 %v892
        %1366 = vmatmul.mubr.f32.gmra.mxu0 %v891
        %v1367 = vpop.f32.mrf.mxu0
        %v1368 = vadd.f32 %v1223, %v1367
        %v1369 = vpop.f32.mrf.mxu0
        %1370 = vmatprep.mubr.f32.mxu0 %v901
        %1371 = vmatmul.mubr.f32.gmra.mxu0 %v900
        %v1372 = vpop.f32.mrf.mxu0
        %v1373 = vadd.f32 %v1228, %v1372
        %v1374 = vpop.f32.mrf.mxu0
        %1375 = vmatprep.mubr.f32.mxu0 %v910
        %1376 = vmatmul.mubr.f32.gmra.mxu0 %v909
        %v1377 = vpop.f32.mrf.mxu0
        %v1378 = vadd.f32 %v1233, %v1377
        %v1379 = vpop.f32.mrf.mxu0
        %1380 = vmatprep.mubr.f32.mxu0 %v919
        %1381 = vmatmul.mubr.f32.gmra.mxu0 %v918
        %v1382 = vpop.f32.mrf.mxu0
        %v1383 = vadd.f32 %v1238, %v1382
        %v1384 = vpop.f32.mrf.mxu0
        %1385 = vmatprep.mubr.f32.mxu0 %v928
        %1386 = vmatmul.mubr.f32.gmra.mxu0 %v927
        %v1387 = vpop.f32.mrf.mxu0
        %v1388 = vadd.f32 %v1243, %v1387
        %v1389 = vpop.f32.mrf.mxu0
        %1390 = vmatprep.mubr.f32.mxu0 %v937
        %1391 = vmatmul.mubr.f32.gmra.mxu0 %v936
        %v1392 = vpop.f32.mrf.mxu0
        %v1393 = vadd.f32 %v1248, %v1392
        %v1394 = vpop.f32.mrf.mxu0
        %1395 = vmatprep.mubr.f32.mxu0 %v946
        %1396 = vmatmul.mubr.f32.gmra.mxu0 %v945
        %v1397 = vpop.f32.mrf.mxu0
        %v1398 = vadd.f32 %v1253, %v1397
        %v1399 = vpop.f32.mrf.mxu0
        %1400 = vmatprep.mubr.f32.mxu0 %v955
        %1401 = vmatmul.mubr.f32.gmra.mxu0 %v954
        %v1402 = vpop.f32.mrf.mxu0
        %v1403 = vadd.f32 %v1258, %v1402
        %v1404 = vpop.f32.mrf.mxu0
        %1405 = vmatprep.mubr.f32.mxu0 %v964
        %1406 = vmatmul.mubr.f32.gmra.mxu0 %v963
        %v1407 = vpop.f32.mrf.mxu0
        %v1408 = vadd.f32 %v1263, %v1407
        %v1409 = vpop.f32.mrf.mxu0
        %1410 = vdwg.mxu0
        %1411 = vmatprep.subr.mxu0 0.0
        %1412 = vmatpush1.msra.mxu0 %v1049
        %1413 = vmatprep.subr.mxu0 0.0
        %1414 = vmatpush1.msra.mxu0 %v1048
        %1415 = vmatprep.subr.mxu0 0.0
        %1416 = vmatpush1.msra.mxu0 %v1047
        %1417 = vmatprep.subr.mxu0 0.0
        %1418 = vmatpush1.msra.mxu0 %v1046
        %1419 = vmatprep.subr.mxu0 0.0
        %1420 = vmatpush1.msra.mxu0 %v1045
        %1421 = vmatprep.subr.mxu0 0.0
        %1422 = vmatpush1.msra.mxu0 %v1044
        %1423 = vmatprep.subr.mxu0 0.0
        %1424 = vmatpush1.msra.mxu0 %v1043
        %1425 = vmatprep.subr.mxu0 0.0
        %1426 = vmatpush1.msra.mxu0 %v1042
        %1427 = vmatprep.subr.mxu0 0.0
        %1428 = vmatpush1.msra.mxu0 %v1041
        %1429 = vmatprep.subr.mxu0 0.0
        %1430 = vmatpush1.msra.mxu0 %v1040
        %1431 = vmatprep.subr.mxu0 0.0
        %1432 = vmatpush1.msra.mxu0 %v1039
        %1433 = vmatprep.subr.mxu0 0.0
        %1434 = vmatpush1.msra.mxu0 %v1038
        %1435 = vmatprep.subr.mxu0 0.0
        %1436 = vmatpush1.msra.mxu0 %v1037
        %1437 = vmatprep.subr.mxu0 0.0
        %1438 = vmatpush1.msra.mxu0 %v1036
        %1439 = vmatprep.subr.mxu0 0.0
        %1440 = vmatpush1.msra.mxu0 %v1035
        %1441 = vmatprep.subr.mxu0 0.0
        %1442 = vmatpush1.msra.mxu0 %v1034
        %1443 = vmatprep.subr.mxu0 0.0
        %1444 = vmatpush2.msra.mxu0 %v1065
        %1445 = vmatprep.subr.mxu0 0.0
        %1446 = vmatpush2.msra.mxu0 %v1064
        %1447 = vmatprep.subr.mxu0 0.0
        %1448 = vmatpush2.msra.mxu0 %v1063
        %1449 = vmatprep.subr.mxu0 0.0
        %1450 = vmatpush2.msra.mxu0 %v1062
        %1451 = vmatprep.subr.mxu0 0.0
        %1452 = vmatpush2.msra.mxu0 %v1061
        %1453 = vmatprep.subr.mxu0 0.0
        %1454 = vmatpush2.msra.mxu0 %v1060
        %1455 = vmatprep.subr.mxu0 0.0
        %1456 = vmatpush2.msra.mxu0 %v1059
        %1457 = vmatprep.subr.mxu0 0.0
        %1458 = vmatpush2.msra.mxu0 %v1058
        %1459 = vmatprep.subr.mxu0 0.0
        %1460 = vmatpush2.msra.mxu0 %v1057
        %1461 = vmatprep.subr.mxu0 0.0
        %1462 = vmatpush2.msra.mxu0 %v1056
        %1463 = vmatprep.subr.mxu0 0.0
        %1464 = vmatpush2.msra.mxu0 %v1055
        %1465 = vmatprep.subr.mxu0 0.0
        %1466 = vmatpush2.msra.mxu0 %v1054
        %1467 = vmatprep.subr.mxu0 0.0
        %1468 = vmatpush2.msra.mxu0 %v1053
        %1469 = vmatprep.subr.mxu0 0.0
        %1470 = vmatpush2.msra.mxu0 %v1052
        %1471 = vmatprep.subr.mxu0 0.0
        %1472 = vmatpush2.msra.mxu0 %v1051
        %1473 = vmatprep.subr.mxu0 0.0
        %1474 = vmatpush2.msra.mxu0 %v1050
        %1475 = vmatprep.mubr.f32.mxu0 %v831
        %1476 = vmatmul.mubr.f32.gmra.mxu0 %v830
        %v1477 = vpop.f32.mrf.mxu0
        %v1478 = vadd.f32 %v1333, %v1477
        %v1479 = vpop.f32.mrf.mxu0
        %1480 = vmatprep.mubr.f32.mxu0 %v840
        %1481 = vmatmul.mubr.f32.gmra.mxu0 %v839
        %v1482 = vpop.f32.mrf.mxu0
        %v1483 = vadd.f32 %v1338, %v1482
        %v1484 = vpop.f32.mrf.mxu0
        %1485 = vmatprep.mubr.f32.mxu0 %v849
        %1486 = vmatmul.mubr.f32.gmra.mxu0 %v848
        %v1487 = vpop.f32.mrf.mxu0
        %v1488 = vadd.f32 %v1343, %v1487
        %v1489 = vpop.f32.mrf.mxu0
        %1490 = vmatprep.mubr.f32.mxu0 %v858
        %1491 = vmatmul.mubr.f32.gmra.mxu0 %v857
        %v1492 = vpop.f32.mrf.mxu0
        %v1493 = vadd.f32 %v1348, %v1492
        %v1494 = vpop.f32.mrf.mxu0
        %1495 = vmatprep.mubr.f32.mxu0 %v867
        %1496 = vmatmul.mubr.f32.gmra.mxu0 %v866
        %v1497 = vpop.f32.mrf.mxu0
        %v1498 = vadd.f32 %v1353, %v1497
        %v1499 = vpop.f32.mrf.mxu0
        %1500 = vmatprep.mubr.f32.mxu0 %v876
        %1501 = vmatmul.mubr.f32.gmra.mxu0 %v875
        %v1502 = vpop.f32.mrf.mxu0
        %v1503 = vadd.f32 %v1358, %v1502
        %v1504 = vpop.f32.mrf.mxu0
        %1505 = vmatprep.mubr.f32.mxu0 %v885
        %1506 = vmatmul.mubr.f32.gmra.mxu0 %v884
        %v1507 = vpop.f32.mrf.mxu0
        %v1508 = vadd.f32 %v1363, %v1507
        %v1509 = vpop.f32.mrf.mxu0
        %1510 = vmatprep.mubr.f32.mxu0 %v894
        %1511 = vmatmul.mubr.f32.gmra.mxu0 %v893
        %v1512 = vpop.f32.mrf.mxu0
        %v1513 = vadd.f32 %v1368, %v1512
        %v1514 = vpop.f32.mrf.mxu0
        %1515 = vmatprep.mubr.f32.mxu0 %v903
        %1516 = vmatmul.mubr.f32.gmra.mxu0 %v902
        %v1517 = vpop.f32.mrf.mxu0
        %v1518 = vadd.f32 %v1373, %v1517
        %v1519 = vpop.f32.mrf.mxu0
        %1520 = vmatprep.mubr.f32.mxu0 %v912
        %1521 = vmatmul.mubr.f32.gmra.mxu0 %v911
        %v1522 = vpop.f32.mrf.mxu0
        %v1523 = vadd.f32 %v1378, %v1522
        %v1524 = vpop.f32.mrf.mxu0
        %1525 = vmatprep.mubr.f32.mxu0 %v921
        %1526 = vmatmul.mubr.f32.gmra.mxu0 %v920
        %v1527 = vpop.f32.mrf.mxu0
        %v1528 = vadd.f32 %v1383, %v1527
        %v1529 = vpop.f32.mrf.mxu0
        %1530 = vmatprep.mubr.f32.mxu0 %v930
        %1531 = vmatmul.mubr.f32.gmra.mxu0 %v929
        %v1532 = vpop.f32.mrf.mxu0
        %v1533 = vadd.f32 %v1388, %v1532
        %v1534 = vpop.f32.mrf.mxu0
        %1535 = vmatprep.mubr.f32.mxu0 %v939
        %1536 = vmatmul.mubr.f32.gmra.mxu0 %v938
        %v1537 = vpop.f32.mrf.mxu0
        %v1538 = vadd.f32 %v1393, %v1537
        %v1539 = vpop.f32.mrf.mxu0
        %1540 = vmatprep.mubr.f32.mxu0 %v948
        %1541 = vmatmul.mubr.f32.gmra.mxu0 %v947
        %v1542 = vpop.f32.mrf.mxu0
        %v1543 = vadd.f32 %v1398, %v1542
        %v1544 = vpop.f32.mrf.mxu0
        %1545 = vmatprep.mubr.f32.mxu0 %v957
        %1546 = vmatmul.mubr.f32.gmra.mxu0 %v956
        %v1547 = vpop.f32.mrf.mxu0
        %v1548 = vadd.f32 %v1403, %v1547
        %v1549 = vpop.f32.mrf.mxu0
        %1550 = vmatprep.mubr.f32.mxu0 %v966
        %1551 = vmatmul.mubr.f32.gmra.mxu0 %v965
        %v1552 = vpop.f32.mrf.mxu0
        %v1553 = vadd.f32 %v1408, %v1552
        %v1554 = vpop.f32.mrf.mxu0
        %1555 = vdwg.mxu0
        %1556 = vmatprep.subr.mxu0 0.0
        %1557 = vmatpush1.msra.mxu0 %v1081
        %1558 = vmatprep.subr.mxu0 0.0
        %1559 = vmatpush1.msra.mxu0 %v1080
        %1560 = vmatprep.subr.mxu0 0.0
        %1561 = vmatpush1.msra.mxu0 %v1079
        %1562 = vmatprep.subr.mxu0 0.0
        %1563 = vmatpush1.msra.mxu0 %v1078
        %1564 = vmatprep.subr.mxu0 0.0
        %1565 = vmatpush1.msra.mxu0 %v1077
        %1566 = vmatprep.subr.mxu0 0.0
        %1567 = vmatpush1.msra.mxu0 %v1076
        %1568 = vmatprep.subr.mxu0 0.0
        %1569 = vmatpush1.msra.mxu0 %v1075
        %1570 = vmatprep.subr.mxu0 0.0
        %1571 = vmatpush1.msra.mxu0 %v1074
        %1572 = vmatprep.subr.mxu0 0.0
        %1573 = vmatpush1.msra.mxu0 %v1073
        %1574 = vmatprep.subr.mxu0 0.0
        %1575 = vmatpush1.msra.mxu0 %v1072
        %1576 = vmatprep.subr.mxu0 0.0
        %1577 = vmatpush1.msra.mxu0 %v1071
        %1578 = vmatprep.subr.mxu0 0.0
        %1579 = vmatpush1.msra.mxu0 %v1070
        %1580 = vmatprep.subr.mxu0 0.0
        %1581 = vmatpush1.msra.mxu0 %v1069
        %1582 = vmatprep.subr.mxu0 0.0
        %1583 = vmatpush1.msra.mxu0 %v1068
        %1584 = vmatprep.subr.mxu0 0.0
        %1585 = vmatpush1.msra.mxu0 %v1067
        %1586 = vmatprep.subr.mxu0 0.0
        %1587 = vmatpush1.msra.mxu0 %v1066
        %1588 = vmatprep.subr.mxu0 0.0
        %1589 = vmatpush2.msra.mxu0 %v1097
        %1590 = vmatprep.subr.mxu0 0.0
        %1591 = vmatpush2.msra.mxu0 %v1096
        %1592 = vmatprep.subr.mxu0 0.0
        %1593 = vmatpush2.msra.mxu0 %v1095
        %1594 = vmatprep.subr.mxu0 0.0
        %1595 = vmatpush2.msra.mxu0 %v1094
        %1596 = vmatprep.subr.mxu0 0.0
        %1597 = vmatpush2.msra.mxu0 %v1093
        %1598 = vmatprep.subr.mxu0 0.0
        %1599 = vmatpush2.msra.mxu0 %v1092
        %1600 = vmatprep.subr.mxu0 0.0
        %1601 = vmatpush2.msra.mxu0 %v1091
        %1602 = vmatprep.subr.mxu0 0.0
        %1603 = vmatpush2.msra.mxu0 %v1090
        %1604 = vmatprep.subr.mxu0 0.0
        %1605 = vmatpush2.msra.mxu0 %v1089
        %1606 = vmatprep.subr.mxu0 0.0
        %1607 = vmatpush2.msra.mxu0 %v1088
        %1608 = vmatprep.subr.mxu0 0.0
        %1609 = vmatpush2.msra.mxu0 %v1087
        %1610 = vmatprep.subr.mxu0 0.0
        %1611 = vmatpush2.msra.mxu0 %v1086
        %1612 = vmatprep.subr.mxu0 0.0
        %1613 = vmatpush2.msra.mxu0 %v1085
        %1614 = vmatprep.subr.mxu0 0.0
        %1615 = vmatpush2.msra.mxu0 %v1084
        %1616 = vmatprep.subr.mxu0 0.0
        %1617 = vmatpush2.msra.mxu0 %v1083
        %1618 = vmatprep.subr.mxu0 0.0
        %1619 = vmatpush2.msra.mxu0 %v1082
        %1620 = vmatprep.mubr.f32.mxu0 %v833
        %1621 = vmatmul.mubr.f32.gmra.mxu0 %v832
        %v1622 = vpop.f32.mrf.mxu0
        %v1623 = vadd.f32 %v1478, %v1622
        %v1624 = vpop.f32.mrf.mxu0
        %1625 = vmatprep.mubr.f32.mxu0 %v842
        %1626 = vmatmul.mubr.f32.gmra.mxu0 %v841
        %v1627 = vpop.f32.mrf.mxu0
        %v1628 = vadd.f32 %v1483, %v1627
        %v1629 = vpop.f32.mrf.mxu0
        %1630 = vmatprep.mubr.f32.mxu0 %v851
        %1631 = vmatmul.mubr.f32.gmra.mxu0 %v850
        %v1632 = vpop.f32.mrf.mxu0
        %v1633 = vadd.f32 %v1488, %v1632
        %v1634 = vpop.f32.mrf.mxu0
        %1635 = vmatprep.mubr.f32.mxu0 %v860
        %1636 = vmatmul.mubr.f32.gmra.mxu0 %v859
        %v1637 = vpop.f32.mrf.mxu0
        %v1638 = vadd.f32 %v1493, %v1637
        %v1639 = vpop.f32.mrf.mxu0
        %1640 = vmatprep.mubr.f32.mxu0 %v869
        %1641 = vmatmul.mubr.f32.gmra.mxu0 %v868
        %v1642 = vpop.f32.mrf.mxu0
        %v1643 = vadd.f32 %v1498, %v1642
        %v1644 = vpop.f32.mrf.mxu0
        %1645 = vmatprep.mubr.f32.mxu0 %v878
        %1646 = vmatmul.mubr.f32.gmra.mxu0 %v877
        %v1647 = vpop.f32.mrf.mxu0
        %v1648 = vadd.f32 %v1503, %v1647
        %v1649 = vpop.f32.mrf.mxu0
        %1650 = vmatprep.mubr.f32.mxu0 %v887
        %1651 = vmatmul.mubr.f32.gmra.mxu0 %v886
        %v1652 = vpop.f32.mrf.mxu0
        %v1653 = vadd.f32 %v1508, %v1652
        %v1654 = vpop.f32.mrf.mxu0
        %1655 = vmatprep.mubr.f32.mxu0 %v896
        %1656 = vmatmul.mubr.f32.gmra.mxu0 %v895
        %v1657 = vpop.f32.mrf.mxu0
        %v1658 = vadd.f32 %v1513, %v1657
        %v1659 = vpop.f32.mrf.mxu0
        %1660 = vmatprep.mubr.f32.mxu0 %v905
        %1661 = vmatmul.mubr.f32.gmra.mxu0 %v904
        %v1662 = vpop.f32.mrf.mxu0
        %v1663 = vadd.f32 %v1518, %v1662
        %v1664 = vpop.f32.mrf.mxu0
        %1665 = vmatprep.mubr.f32.mxu0 %v914
        %1666 = vmatmul.mubr.f32.gmra.mxu0 %v913
        %v1667 = vpop.f32.mrf.mxu0
        %v1668 = vadd.f32 %v1523, %v1667
        %v1669 = vpop.f32.mrf.mxu0
        %1670 = vmatprep.mubr.f32.mxu0 %v923
        %1671 = vmatmul.mubr.f32.gmra.mxu0 %v922
        %v1672 = vpop.f32.mrf.mxu0
        %v1673 = vadd.f32 %v1528, %v1672
        %v1674 = vpop.f32.mrf.mxu0
        %1675 = vmatprep.mubr.f32.mxu0 %v932
        %1676 = vmatmul.mubr.f32.gmra.mxu0 %v931
        %v1677 = vpop.f32.mrf.mxu0
        %v1678 = vadd.f32 %v1533, %v1677
        %v1679 = vpop.f32.mrf.mxu0
        %1680 = vmatprep.mubr.f32.mxu0 %v941
        %1681 = vmatmul.mubr.f32.gmra.mxu0 %v940
        %v1682 = vpop.f32.mrf.mxu0
        %v1683 = vadd.f32 %v1538, %v1682
        %v1684 = vpop.f32.mrf.mxu0
        %1685 = vmatprep.mubr.f32.mxu0 %v950
        %1686 = vmatmul.mubr.f32.gmra.mxu0 %v949
        %v1687 = vpop.f32.mrf.mxu0
        %v1688 = vadd.f32 %v1543, %v1687
        %v1689 = vpop.f32.mrf.mxu0
        %1690 = vmatprep.mubr.f32.mxu0 %v959
        %1691 = vmatmul.mubr.f32.gmra.mxu0 %v958
        %v1692 = vpop.f32.mrf.mxu0
        %v1693 = vadd.f32 %v1548, %v1692
        %v1694 = vpop.f32.mrf.mxu0
        %1695 = vmatprep.mubr.f32.mxu0 %v968
        %1696 = vmatmul.mubr.f32.gmra.mxu0 %v967
        %v1697 = vpop.f32.mrf.mxu0
        %v1698 = vadd.f32 %v1553, %v1697
        %v1699 = vpop.f32.mrf.mxu0
        %1700 = vdwg.mxu0
        %1701 = vmatprep.subr.mxu0 0.0
        %1702 = vmatpush1.msra.mxu0 %v1113
        %1703 = vmatprep.subr.mxu0 0.0
        %1704 = vmatpush1.msra.mxu0 %v1112
        %1705 = vmatprep.subr.mxu0 0.0
        %1706 = vmatpush1.msra.mxu0 %v1111
        %1707 = vmatprep.subr.mxu0 0.0
        %1708 = vmatpush1.msra.mxu0 %v1110
        %1709 = vmatprep.subr.mxu0 0.0
        %1710 = vmatpush1.msra.mxu0 %v1109
        %1711 = vmatprep.subr.mxu0 0.0
        %1712 = vmatpush1.msra.mxu0 %v1108
        %1713 = vmatprep.subr.mxu0 0.0
        %1714 = vmatpush1.msra.mxu0 %v1107
        %1715 = vmatprep.subr.mxu0 0.0
        %1716 = vmatpush1.msra.mxu0 %v1106
        %1717 = vmatprep.subr.mxu0 0.0
        %1718 = vmatpush1.msra.mxu0 %v1105
        %1719 = vmatprep.subr.mxu0 0.0
        %1720 = vmatpush1.msra.mxu0 %v1104
        %1721 = vmatprep.subr.mxu0 0.0
        %1722 = vmatpush1.msra.mxu0 %v1103
        %1723 = vmatprep.subr.mxu0 0.0
        %1724 = vmatpush1.msra.mxu0 %v1102
        %1725 = vmatprep.subr.mxu0 0.0
        %1726 = vmatpush1.msra.mxu0 %v1101
        %1727 = vmatprep.subr.mxu0 0.0
        %1728 = vmatpush1.msra.mxu0 %v1100
        %1729 = vmatprep.subr.mxu0 0.0
        %1730 = vmatpush1.msra.mxu0 %v1099
        %1731 = vmatprep.subr.mxu0 0.0
        %1732 = vmatpush1.msra.mxu0 %v1098
        %1733 = vmatprep.subr.mxu0 0.0
        %1734 = vmatpush2.msra.mxu0 0.0
        %1735 = vmatprep.subr.mxu0 0.0
        %1736 = vmatpush2.msra.mxu0 0.0
        %1737 = vmatprep.subr.mxu0 0.0
        %1738 = vmatpush2.msra.mxu0 0.0
        %1739 = vmatprep.subr.mxu0 0.0
        %1740 = vmatpush2.msra.mxu0 0.0
        %1741 = vmatprep.subr.mxu0 0.0
        %1742 = vmatpush2.msra.mxu0 0.0
        %1743 = vmatprep.subr.mxu0 0.0
        %1744 = vmatpush2.msra.mxu0 0.0
        %1745 = vmatprep.subr.mxu0 0.0
        %1746 = vmatpush2.msra.mxu0 0.0
        %1747 = vmatprep.subr.mxu0 0.0
        %1748 = vmatpush2.msra.mxu0 0.0
        %1749 = vmatprep.subr.mxu0 0.0
        %1750 = vmatpush2.msra.mxu0 0.0
        %1751 = vmatprep.subr.mxu0 0.0
        %1752 = vmatpush2.msra.mxu0 0.0
        %1753 = vmatprep.subr.mxu0 0.0
        %1754 = vmatpush2.msra.mxu0 0.0
        %1755 = vmatprep.subr.mxu0 0.0
        %1756 = vmatpush2.msra.mxu0 0.0
        %1757 = vmatprep.subr.mxu0 0.0
        %1758 = vmatpush2.msra.mxu0 0.0
        %1759 = vmatprep.subr.mxu0 0.0
        %1760 = vmatpush2.msra.mxu0 0.0
        %1761 = vmatprep.subr.mxu0 0.0
        %1762 = vmatpush2.msra.mxu0 0.0
        %1763 = vmatprep.subr.mxu0 0.0
        %1764 = vmatpush2.msra.mxu0 0.0
        %1765 = vmatprep.mubr.f32.mxu0 0.0
        %1766 = vmatmul.mubr.f32.gmra.mxu0 %v834
        %v1767 = vpop.f32.mrf.mxu0
        %v1768 = vadd.f32 %v1623, %v1767
        %v1769 = vpop.f32.mrf.mxu0
        %1770 = vmatprep.mubr.f32.mxu0 0.0
        %1771 = vmatmul.mubr.f32.gmra.mxu0 %v843
        %v1772 = vpop.f32.mrf.mxu0
        %v1773 = vadd.f32 %v1628, %v1772
        %v1774 = vpop.f32.mrf.mxu0
        %1775 = vmatprep.mubr.f32.mxu0 0.0
        %1776 = vmatmul.mubr.f32.gmra.mxu0 %v852
        %v1777 = vpop.f32.mrf.mxu0
        %v1778 = vadd.f32 %v1633, %v1777
        %v1779 = vpop.f32.mrf.mxu0
        %1780 = vmatprep.mubr.f32.mxu0 0.0
        %1781 = vmatmul.mubr.f32.gmra.mxu0 %v861
        %v1782 = vpop.f32.mrf.mxu0
        %v1783 = vadd.f32 %v1638, %v1782
        %v1784 = vpop.f32.mrf.mxu0
        %1785 = vmatprep.mubr.f32.mxu0 0.0
        %1786 = vmatmul.mubr.f32.gmra.mxu0 %v870
        %v1787 = vpop.f32.mrf.mxu0
        %v1788 = vadd.f32 %v1643, %v1787
        %v1789 = vpop.f32.mrf.mxu0
        %1790 = vmatprep.mubr.f32.mxu0 0.0
        %1791 = vmatmul.mubr.f32.gmra.mxu0 %v879
        %v1792 = vpop.f32.mrf.mxu0
        %v1793 = vadd.f32 %v1648, %v1792
        %v1794 = vpop.f32.mrf.mxu0
        %1795 = vmatprep.mubr.f32.mxu0 0.0
        %1796 = vmatmul.mubr.f32.gmra.mxu0 %v888
        %v1797 = vpop.f32.mrf.mxu0
        %v1798 = vadd.f32 %v1653, %v1797
        %v1799 = vpop.f32.mrf.mxu0
        %1800 = vmatprep.mubr.f32.mxu0 0.0
        %1801 = vmatmul.mubr.f32.gmra.mxu0 %v897
        %v1802 = vpop.f32.mrf.mxu0
        %v1803 = vadd.f32 %v1658, %v1802
        %v1804 = vpop.f32.mrf.mxu0
        %1805 = vmatprep.mubr.f32.mxu0 0.0
        %1806 = vmatmul.mubr.f32.gmra.mxu0 %v906
        %v1807 = vpop.f32.mrf.mxu0
        %v1808 = vadd.f32 %v1663, %v1807
        %v1809 = vpop.f32.mrf.mxu0
        %1810 = vmatprep.mubr.f32.mxu0 0.0
        %1811 = vmatmul.mubr.f32.gmra.mxu0 %v915
        %v1812 = vpop.f32.mrf.mxu0
        %v1813 = vadd.f32 %v1668, %v1812
        %v1814 = vpop.f32.mrf.mxu0
        %1815 = vmatprep.mubr.f32.mxu0 0.0
        %1816 = vmatmul.mubr.f32.gmra.mxu0 %v924
        %v1817 = vpop.f32.mrf.mxu0
        %v1818 = vadd.f32 %v1673, %v1817
        %v1819 = vpop.f32.mrf.mxu0
        %1820 = vmatprep.mubr.f32.mxu0 0.0
        %1821 = vmatmul.mubr.f32.gmra.mxu0 %v933
        %v1822 = vpop.f32.mrf.mxu0
        %v1823 = vadd.f32 %v1678, %v1822
        %v1824 = vpop.f32.mrf.mxu0
        %1825 = vmatprep.mubr.f32.mxu0 0.0
        %1826 = vmatmul.mubr.f32.gmra.mxu0 %v942
        %v1827 = vpop.f32.mrf.mxu0
        %v1828 = vadd.f32 %v1683, %v1827
        %v1829 = vpop.f32.mrf.mxu0
        %1830 = vmatprep.mubr.f32.mxu0 0.0
        %1831 = vmatmul.mubr.f32.gmra.mxu0 %v951
        %v1832 = vpop.f32.mrf.mxu0
        %v1833 = vadd.f32 %v1688, %v1832
        %v1834 = vpop.f32.mrf.mxu0
        %1835 = vmatprep.mubr.f32.mxu0 0.0
        %1836 = vmatmul.mubr.f32.gmra.mxu0 %v960
        %v1837 = vpop.f32.mrf.mxu0
        %v1838 = vadd.f32 %v1693, %v1837
        %v1839 = vpop.f32.mrf.mxu0
        %1840 = vmatprep.mubr.f32.mxu0 0.0
        %1841 = vmatmul.mubr.f32.gmra.mxu0 %v969
        %v1842 = vpop.f32.mrf.mxu0
        %v1843 = vadd.f32 %v1698, %v1842
        %v1844 = vpop.f32.mrf.mxu0
        %1845 = vdwg.mxu0
        %v1846 = vmax.f32 %v1768, 0.0
        %v1847 = vmax.f32 %v1773, 0.0
        %v1848 = vmax.f32 %v1778, 0.0
        %v1849 = vmax.f32 %v1783, 0.0
        %v1850 = vmax.f32 %v1788, 0.0
        %v1851 = vmax.f32 %v1793, 0.0
        %v1852 = vmax.f32 %v1798, 0.0
        %v1853 = vmax.f32 %v1803, 0.0
        %v1854 = vmax.f32 %v1808, 0.0
        %v1855 = vmax.f32 %v1813, 0.0
        %v1856 = vmax.f32 %v1818, 0.0
        %v1857 = vmax.f32 %v1823, 0.0
        %v1858 = vmax.f32 %v1828, 0.0
        %v1859 = vmax.f32 %v1833, 0.0
        %v1860 = vmax.f32 %v1838, 0.0
        %v1861 = vmax.f32 %v1843, 0.0
        %1862 = vst [vmem:[%s187] sm:$0xff] %v1846
        %1863 = vst [vmem:[%s187 + $0x8] sm:$0xff] %v1847
        %1864 = vst [vmem:[%s187 + $0x10] sm:$0xff] %v1848
        %1865 = vst [vmem:[%s187 + $0x18] sm:$0xff] %v1849
        %1866 = vst [vmem:[%s187 + $0x20] sm:$0xff] %v1850
        %1867 = vst [vmem:[%s187 + $0x28] sm:$0xff] %v1851
        %1868 = vst [vmem:[%s187 + $0x30] sm:$0xff] %v1852
        %1869 = vst [vmem:[%s187 + $0x38] sm:$0xff] %v1853
        %1870 = vst [vmem:[%s187 + $0x40] sm:$0xff] %v1854
        %1871 = vst [vmem:[%s187 + $0x48] sm:$0xff] %v1855
        %1872 = vst [vmem:[%s187 + $0x50] sm:$0xff] %v1856
        %1873 = vst [vmem:[%s187 + $0x58] sm:$0xff] %v1857
        %1874 = vst [vmem:[%s187 + $0x60] sm:$0xff] %v1858
        %1875 = vst [vmem:[%s187 + $0x68] sm:$0xff] %v1859
        %1876 = vst [vmem:[%s187 + $0x70] sm:$0xff] %v1860
        %1877 = vst [vmem:[%s187 + $0x78] sm:$0xff] %v1861
        %s1878 = sand.u32 %s111, 1
        %s1879 = scalar_lea.sflag [#allocation4], %s1878
        %s1880 = sand.u32 %s111, 1
        %s1881 = smul.addr %s1880, 128
        %s1882 = scalar_lea.vmem [#allocation3], %s1881
        // Predicated region
        $region33: #{tpu_custom_call.1} parent=31 // pred_check
          %p1883 = pneg %p121
        $region34: #{tpu_custom_call.1} parent=31 // pred_check_branch
          %1885 = sbr.rel (%p1883) target = $region36
        $region35: #{tpu_custom_call.1} parent=31 // pred_region
          %s1886 = smul.u32 8, %s22
          %s1888 = ssub.s32 2048, 2048
          %1889 = vsyncadd %s1879, %s1888
          %s1890 = smul.addr %s1886, 2
          %s1891 = smul.addr %s21, 32
          %s1892 = sadd.s32 %s1890, %s1891
          %s1893 = smul.addr %s1892, 128
          %s1894 = scalar_lea.hbm %s3, %s1893
          %s1895 = sshll.u32 %s1882, 4
          %s1896 = int_to_ptr.vmem [resolvable:$true] %s1895
          %1901 = dma.vmem_to_hbm [thread:$0]  %s1896, 2048, %s1894, %s1879, 128, 128, 8
        $region36: #{tpu_custom_call.1} parent=31 // pred_fallthru
          _
      $region32: #{tpu_custom_call.1} parent=5 // pred_fallthru
        _
      %p1902 = scmp.le.s32.totalorder 2, %s12
      // Predicated region
      $region37: #{tpu_custom_call.1} parent=5 // pred_check
        %p1903 = pneg %p1902
      $region38: #{tpu_custom_call.1} parent=5 // pred_check_branch
        %1905 = sbr.rel (%p1903) target = $region40
      $region39: #{tpu_custom_call.1} parent=5 // pred_region
        %s1906 = ssub.s32 %s12, 2
        // Predicated region
        $region41: #{tpu_custom_call.1} parent=39 // pred_check
          %p1907 = pneg %p127
        $region42: #{tpu_custom_call.1} parent=39 // pred_check_branch
          %1909 = sbr.rel (%p1907) target = $region44
        $region43: #{tpu_custom_call.1} parent=39 // pred_region
          %s1910 = sand.u32 %s112, 1
          %s1911 = scalar_lea.sflag [#allocation4], %s1910
          %s1912 = sand.u32 %s112, 1
          %s1913 = smul.addr %s1912, 128
          %s1914 = scalar_lea.vmem [#allocation3], %s1913
          %1915 = dma.done %s1911, 2048
        $region44: #{tpu_custom_call.1} parent=39 // pred_fallthru
          _
      $region40: #{tpu_custom_call.1} parent=5 // pred_fallthru
        _
    $region6: #{tpu_custom_call.1} parent=1 // loop_footer
      %s16 = sadd.s32 1, %s12
    $region7: #{tpu_custom_call.1} parent=1 // loop_footer_branch
      %11 = sbr.rel target = $region3
    $region8: #{tpu_custom_call.1} parent=1 // loop_exit
      _
    %1916 = vsyncpa [#allocation4], 1
    %s1917 = scalar_lea.sflag [#allocation4], 1
    %1918 = vsyncpa %s1917, 1

</llo_original>
